<compile_context>
chip_gen: v5e
topology: v5e:2x2
jax: 0.10.0
libtpu: 0.0.40
codegen_flags: <defaults>
</compile_context>

<pallas_src>
import math
from functools import partial

import jax
import jax.numpy as jnp
from jax.experimental import pallas as pl
from jax.experimental.pallas import tpu as pltpu

# ---- model hyper-parameters ("4h_2l" variant, small) ----
S = 8          # sequence length
B = 2          # batch
D = 32         # d_model
H = 4          # nhead
DH = D // H    # head dim
DFF = 64       # dim_feedforward
NUM_LAYERS = 2
EPS = 1e-5     # nn.LayerNorm default eps

R_ROWS = S * B                  # fused (seq*batch) row count = 16
VEC_W = 128                     # lane width of the packed vector slab
VECS_PER_LAYER = 8              # bqkv, bo, ln1w, ln1b, b1, b2, ln2w, ln2b
N_VEC_ROWS = NUM_LAYERS * VECS_PER_LAYER + 2   # + final-norm scale/bias

_NEG_INF = -1e9
_QKT_DIMS = (((1,), (1,)), ((), ()))   # (R,DH) x (R,DH) -> (R,R), contract last dims


# ----------------------------------------------------------------------------
# in-kernel helpers
# ----------------------------------------------------------------------------
def _layernorm(x, w, b):
    mu = jnp.mean(x, axis=-1, keepdims=True)
    var = jnp.mean((x - mu) ** 2, axis=-1, keepdims=True)
    return (x - mu) * jax.lax.rsqrt(var + EPS) * w + b


# ----------------------------------------------------------------------------
# fused Pallas kernel: all layers + (optional) final norm, single grid step
# ----------------------------------------------------------------------------
def fused_encoder_kernel(x_ref, wqkv_ref, wo_ref, w1_ref, w2_ref, vec_ref,
                         o_ref, *, apply_final_norm):
    """x_ref: (R, D) with R = S*B (row r = s*B + b).

    wqkv_ref: (L, D, 3D)   pre-transposed, q-part pre-scaled by 1/sqrt(DH)
    wo_ref:   (L*H, DH, D) out_proj pre-sliced per head
    w1_ref:   (L, D, DFF)
    w2_ref:   (L, DFF, D)
    vec_ref:  (N_VEC_ROWS, 128) packed small vectors (one per row, lane 0 start)
    """
    x = x_ref[...].astype(jnp.float32)          # (R, D)

    # additive "same batch" mask, built in-kernel: 0 for same-batch pairs,
    # -1e9 otherwise (row r corresponds to batch r % B).
    rb = jax.lax.broadcasted_iota(jnp.int32, (R_ROWS, R_ROWS), 0) % B
    cb = jax.lax.broadcasted_iota(jnp.int32, (R_ROWS, R_ROWS), 1) % B
    mask = jnp.where(rb == cb, 0.0, _NEG_INF)   # (R, R) f32

    def vec(row, n):                            # static (1, n) slice of the slab
        return vec_ref[row:row + 1, :n]

    for l in range(NUM_LAYERS):                 # static unroll (2 layers)
        base = l * VECS_PER_LAYER

        # --- multi-head self attention (x @ W layout; q pre-scaled) ----------
        qkv = jnp.dot(x, wqkv_ref[l], preferred_element_type=jnp.float32) \
            + vec(base + 0, 3 * D)              # (R, 3D)

        attn = None
        for h in range(H):                      # static unroll (4 heads)
            qh = qkv[:, h * DH:(h + 1) * DH]            # (R, DH), already scaled
            kh = qkv[:, D + h * DH:D + (h + 1) * DH]
            vh = qkv[:, 2 * D + h * DH:2 * D + (h + 1) * DH]

            s = jax.lax.dot_general(qh, kh, _QKT_DIMS,
                                    preferred_element_type=jnp.float32)  # (R, R)
            s = s + mask                        # block cross-batch attention
            s = s - jnp.max(s, axis=-1, keepdims=True)
            p = jnp.exp(s)
            inv = 1.0 / jnp.sum(p, axis=-1, keepdims=True)   # exact, deferred norm
            pv = jnp.dot(p, vh, preferred_element_type=jnp.float32) * inv  # (R, DH)
            # fold head recombination into out_proj: accumulate pv @ Wo_h
            ho = jnp.dot(pv, wo_ref[l * H + h],
                         preferred_element_type=jnp.float32)             # (R, D)
            attn = ho if attn is None else attn + ho
        attn = attn + vec(base + 1, D)          # out_proj bias

        # residual + LayerNorm 1 (post-norm)
        x = _layernorm(x + attn, vec(base + 2, D), vec(base + 3, D))

        # --- feed-forward -----------------------------------------------------
        h1 = jnp.dot(x, w1_ref[l], preferred_element_type=jnp.float32) \
            + vec(base + 4, DFF)
        h1 = jnp.maximum(h1, 0.0)               # ReLU
        h2 = jnp.dot(h1, w2_ref[l], preferred_element_type=jnp.float32) \
            + vec(base + 5, D)

        # residual + LayerNorm 2
        x = _layernorm(x + h2, vec(base + 6, D), vec(base + 7, D))

    if apply_final_norm:                        # static (trace-time) flag
        fbase = NUM_LAYERS * VECS_PER_LAYER
        x = _layernorm(x, vec(fbase, D), vec(fbase + 1, D))

    o_ref[...] = x.astype(o_ref.dtype)


# ----------------------------------------------------------------------------
# wrapper
# ----------------------------------------------------------------------------
@partial(jax.jit, static_argnames=("apply_final_norm",))
def transformer_encoder_us(src_snd, kernel_params, apply_final_norm=True):
    """src_snd: (S, N, E) like PyTorch (batch_first=False).  Returns (S, N, E).

    kernel_params: output of pack_params().
    """
    S_, B_, D_ = src_snd.shape
    R = S_ * B_
    x2 = src_snd.reshape(R, D_)                 # contiguous reshape -> free (no copy)

    kern = partial(fused_encoder_kernel, apply_final_norm=apply_final_norm)
    vmem = pl.BlockSpec(memory_space=pltpu.MemorySpace.VMEM)

    out2 = pl.pallas_call(
        kern,
        out_shape=jax.ShapeDtypeStruct((R, D_), src_snd.dtype),
        in_specs=[vmem] * (1 + len(kernel_params)),
        out_specs=vmem,
    )(x2, *kernel_params)

    return out2.reshape(S_, B_, D_)


def pack_params(layer_params, final_norm):
    """Repack PyTorch-layout params for the kernel:
      * weight matrices pre-transposed for `x @ W` (output dim on lanes),
        stacked over layers; 1/sqrt(DH) folded into the q slice of wqkv/bqkv,
      * out_proj pre-sliced into per-head (DH, D) blocks, stacked as (L*H, DH, D),
      * all small vectors packed into one lane-dense (N_VEC_ROWS, 128) slab.
    """
    scale = 1.0 / math.sqrt(DH)

    def pad_row(v):
        v = jnp.asarray(v, jnp.float32).reshape(-1)
        return jnp.pad(v, (0, VEC_W - v.shape[0]))

    wqkv_t, wo_h, w1_t, w2_t, rows = [], [], [], [], []
    for (wqkv, bqkv, wo, bo, ln1w, ln1b, w1, b1, w2, b2, ln2w, ln2b) in layer_params:
        wqkv_s = wqkv.at[:D, :].multiply(scale)        # fold attention scale into q
        bqkv_s = bqkv.at[:D].multiply(scale)
        wqkv_t.append(wqkv_s.T)                        # (D, 3D)
        wo_h.append(wo.T.reshape(H, DH, D))            # per-head out_proj blocks
        w1_t.append(w1.T)                              # (D, DFF)
        w2_t.append(w2.T)                              # (DFF, D)
        rows += [pad_row(bqkv_s), pad_row(bo), pad_row(ln1w), pad_row(ln1b),
                 pad_row(b1), pad_row(b2), pad_row(ln2w), pad_row(ln2b)]
    rows += [pad_row(final_norm[0]), pad_row(final_norm[1])]

    return (jnp.stack(wqkv_t),                          # (L, D, 3D)
            jnp.concatenate(wo_h, axis=0),              # (L*H, DH, D)
            jnp.stack(w1_t),                            # (L, D, DFF)
            jnp.stack(w2_t),                            # (L, DFF, D)
            jnp.stack(rows))                            # (N_VEC_ROWS, 128)


# ----------------------------------------------------------------------------
# pure-JAX reference (PyTorch-layout params, HIGHEST matmul precision)
# ----------------------------------------------------------------------------
_HP = jax.lax.Precision.HIGHEST


def _layernorm_ref(x, w, b):
    mu = jnp.mean(x, axis=-1, keepdims=True)
    var = jnp.mean((x - mu) ** 2, axis=-1, keepdims=True)
    return (x - mu) * jax.lax.rsqrt(var + EPS) * w + b


def _ref_layer(x, params):  # x: (B, S, D)
    (wqkv, bqkv, wo, bo, ln1w, ln1b, w1, b1, w2, b2, ln2w, ln2b) = params
    Bc, Sc, Dc = x.shape
    qkv = jnp.einsum('bsd,ed->bse', x, wqkv, precision=_HP) + bqkv
    q, k, v = qkv[..., :D], qkv[..., D:2 * D], qkv[..., 2 * D:]
    qh = q.reshape(Bc, Sc, H, DH).transpose(0, 2, 1, 3) / math.sqrt(DH)
    kh = k.reshape(Bc, Sc, H, DH).transpose(0, 2, 1, 3)
    vh = v.reshape(Bc, Sc, H, DH).transpose(0, 2, 1, 3)
    s = jnp.einsum('bhqd,bhkd->bhqk', qh, kh, precision=_HP)
    p = jax.nn.softmax(s, axis=-1)
    a = jnp.einsum('bhqk,bhkd->bhqd', p, vh, precision=_HP)
    a = a.transpose(0, 2, 1, 3).reshape(Bc, Sc, Dc)
    a = jnp.einsum('bsd,ed->bse', a, wo, precision=_HP) + bo
    x = _layernorm_ref(x + a, ln1w, ln1b)
    h = jnp.maximum(jnp.einsum('bsd,fd->bsf', x, w1, precision=_HP) + b1, 0.0)
    h = jnp.einsum('bsf,df->bsd', h, w2, precision=_HP) + b2
    return _layernorm_ref(x + h, ln2w, ln2b)


def _ref_encoder(src_snd, layer_params, final_norm=None):
    x = jnp.transpose(src_snd, (1, 0, 2))       # (B, S, D)
    for params in layer_params:
        x = _ref_layer(x, params)
    if final_norm is not None:
        x = _layernorm_ref(x, *final_norm)
    return jnp.transpose(x, (1, 0, 2))          # (S, B, D)


# ----------------------------------------------------------------------------
# deterministic synthetic parameters (PyTorch nn.TransformerEncoderLayer layout)
# ----------------------------------------------------------------------------
def _uniform(key, shape, fan_in):
    bound = 1.0 / math.sqrt(fan_in)
    return jax.random.uniform(key, shape, jnp.float32, -bound, bound)


def init_layer_params(key):
    ks = jax.random.split(key, 8)
    wqkv = _uniform(ks[0], (3 * D, D), D)       # in_proj_weight
    bqkv = _uniform(ks[1], (3 * D,), D)         # in_proj_bias
    wo = _uniform(ks[2], (D, D), D)             # out_proj.weight
    bo = _uniform(ks[3], (D,), D)               # out_proj.bias
    ln1w = jnp.ones((D,), jnp.float32)
    ln1b = jnp.zeros((D,), jnp.float32)
    w1 = _uniform(ks[4], (DFF, D), D)           # linear1.weight
    b1 = _uniform(ks[5], (DFF,), D)
    w2 = _uniform(ks[6], (D, DFF), DFF)         # linear2.weight
    b2 = _uniform(ks[7], (D,), DFF)
    ln2w = jnp.ones((D,), jnp.float32)
    ln2b = jnp.zeros((D,), jnp.float32)
    return (wqkv, bqkv, wo, bo, ln1w, ln1b, w1, b1, w2, b2, ln2w, ln2b)


# ----------------------------------------------------------------------------
if __name__ == "__main__":
    root = jax.random.PRNGKey(0)
    k_src, k_l0, k_l1 = jax.random.split(root, 3)

    src = jax.random.normal(k_src, (S, B, D), jnp.float32)     # (seq, batch, d_model)
    layer_params = [init_layer_params(k_l0), init_layer_params(k_l1)]
    final_norm = (jnp.ones((D,), jnp.float32), jnp.zeros((D,), jnp.float32))

    kparams = pack_params(layer_params, final_norm)

    out = transformer_encoder_us(src, kparams, apply_final_norm=True)
    out = jax.block_until_ready(out)

    ref = _ref_encoder(src, layer_params, final_norm)
    assert out.shape == (S, B, D)
    err = float(jnp.max(jnp.abs(out - ref)))
    assert err < 1e-3, err

    print("KERNEL_OK")
</pallas_src>

<mosaic_0001>
module attributes {stable_mosaic.version = 11 : i64} {
  func.func @fused_encoder_kernel(%arg0: memref<16x32xf32, #tpu.memory_space<vmem>>, %arg1: memref<2x32x96xf32, #tpu.memory_space<vmem>>, %arg2: memref<8x8x32xf32, #tpu.memory_space<vmem>>, %arg3: memref<2x32x64xf32, #tpu.memory_space<vmem>>, %arg4: memref<2x64x32xf32, #tpu.memory_space<vmem>>, %arg5: memref<18x128xf32, #tpu.memory_space<vmem>>, %arg6: memref<16x32xf32, #tpu.memory_space<vmem>>) attributes {dimension_semantics = [], scalar_prefetch = 0 : i64, scratch_operands = 0 : i64, tpu.core_type = #tpu.core_type<tc>} {
    %c0 = arith.constant 0 : index
    %c0_0 = arith.constant 0 : index
    %0 = vector.load %arg0[%c0, %c0_0] : memref<16x32xf32, #tpu.memory_space<vmem>>, vector<16x32xf32>
    %1 = tpu.iota {dimensions = array<i32: 0>} : vector<16x16xi32>
    %c2_i32 = arith.constant 2 : i32
    %c0_i32 = arith.constant 0 : i32
    %2 = arith.cmpi eq, %c2_i32, %c0_i32 : i32
    %c1_i32 = arith.constant 1 : i32
    %3 = arith.select %2, %c1_i32, %c2_i32 : i32
    %4 = vector.broadcast %3 : i32 to vector<16x16xi32>
    %5 = arith.remsi %1, %4 : vector<16x16xi32>
    %c0_i32_1 = arith.constant 0 : i32
    %6 = vector.broadcast %c0_i32_1 : i32 to vector<16x16xi32>
    %7 = arith.cmpi ne, %5, %6 : vector<16x16xi32>
    %c0_i32_2 = arith.constant 0 : i32
    %8 = vector.broadcast %c0_i32_2 : i32 to vector<16x16xi32>
    %9 = arith.cmpi slt, %5, %8 : vector<16x16xi32>
    %c0_i32_3 = arith.constant 0 : i32
    %10 = arith.cmpi slt, %3, %c0_i32_3 : i32
    %11 = vector.broadcast %10 : i1 to vector<16x16xi1>
    %12 = vector.broadcast %11 : vector<16x16xi1> to vector<16x16xi1>
    %13 = arith.xori %9, %12 : vector<16x16xi1>
    %14 = arith.andi %13, %7 : vector<16x16xi1>
    %15 = vector.broadcast %3 : i32 to vector<16x16xi32>
    %16 = arith.addi %5, %15 : vector<16x16xi32>
    %17 = arith.select %14, %16, %5 : vector<16x16xi1>, vector<16x16xi32>
    %18 = tpu.iota {dimensions = array<i32: 1>} : vector<16x16xi32>
    %c2_i32_4 = arith.constant 2 : i32
    %c0_i32_5 = arith.constant 0 : i32
    %19 = arith.cmpi eq, %c2_i32_4, %c0_i32_5 : i32
    %c1_i32_6 = arith.constant 1 : i32
    %20 = arith.select %19, %c1_i32_6, %c2_i32_4 : i32
    %21 = vector.broadcast %20 : i32 to vector<16x16xi32>
    %22 = arith.remsi %18, %21 : vector<16x16xi32>
    %c0_i32_7 = arith.constant 0 : i32
    %23 = vector.broadcast %c0_i32_7 : i32 to vector<16x16xi32>
    %24 = arith.cmpi ne, %22, %23 : vector<16x16xi32>
    %c0_i32_8 = arith.constant 0 : i32
    %25 = vector.broadcast %c0_i32_8 : i32 to vector<16x16xi32>
    %26 = arith.cmpi slt, %22, %25 : vector<16x16xi32>
    %c0_i32_9 = arith.constant 0 : i32
    %27 = arith.cmpi slt, %20, %c0_i32_9 : i32
    %28 = vector.broadcast %27 : i1 to vector<16x16xi1>
    %29 = vector.broadcast %28 : vector<16x16xi1> to vector<16x16xi1>
    %30 = arith.xori %26, %29 : vector<16x16xi1>
    %31 = arith.andi %30, %24 : vector<16x16xi1>
    %32 = vector.broadcast %20 : i32 to vector<16x16xi32>
    %33 = arith.addi %22, %32 : vector<16x16xi32>
    %34 = arith.select %31, %33, %22 : vector<16x16xi1>, vector<16x16xi32>
    %35 = arith.cmpi eq, %17, %34 : vector<16x16xi32>
    %cst = arith.constant 0.000000e+00 : f32
    %cst_10 = arith.constant -1.000000e+09 : f32
    %36 = vector.broadcast %cst : f32 to vector<16x16xf32>
    %37 = vector.broadcast %cst_10 : f32 to vector<16x16xf32>
    %38 = arith.select %35, %36, %37 : vector<16x16xi1>, vector<16x16xf32>
    %c0_11 = arith.constant 0 : index
    %c0_12 = arith.constant 0 : index
    %c0_13 = arith.constant 0 : index
    %39 = vector.load %arg1[%c0_11, %c0_12, %c0_13] : memref<2x32x96xf32, #tpu.memory_space<vmem>>, vector<1x32x96xf32>
    %40 = vector.shape_cast %39 : vector<1x32x96xf32> to vector<32x96xf32>
    %cst_14 = arith.constant dense<0.000000e+00> : vector<16x96xf32>
    %41 = tpu.matmul %0, %40, %cst_14 {dimension_numbers = #tpu.dot_dimension_numbers<[1], [0], [0], [1], [0, 0, 1, 1], [], []>} : vector<16x32xf32>, vector<32x96xf32>, vector<16x96xf32> -> vector<16x96xf32>
    %c0_15 = arith.constant 0 : index
    %c0_16 = arith.constant 0 : index
    %42 = vector.load %arg5[%c0_15, %c0_16] : memref<18x128xf32, #tpu.memory_space<vmem>>, vector<1x96xf32>
    %43 = vector.broadcast %42 : vector<1x96xf32> to vector<16x96xf32>
    %44 = arith.addf %41, %43 : vector<16x96xf32>
    %45 = vector.extract_strided_slice %44 {offsets = [0, 0], sizes = [16, 8], strides = [1, 1]} : vector<16x96xf32> to vector<16x8xf32>
    %46 = vector.extract_strided_slice %44 {offsets = [0, 32], sizes = [16, 8], strides = [1, 1]} : vector<16x96xf32> to vector<16x8xf32>
    %47 = vector.extract_strided_slice %44 {offsets = [0, 64], sizes = [16, 8], strides = [1, 1]} : vector<16x96xf32> to vector<16x8xf32>
    %cst_17 = arith.constant dense<0.000000e+00> : vector<16x16xf32>
    %48 = tpu.matmul %45, %46, %cst_17 {dimension_numbers = #tpu.dot_dimension_numbers<[1], [1], [0], [0], [0, 0, 1, 0], [], []>} : vector<16x8xf32>, vector<16x8xf32>, vector<16x16xf32> -> vector<16x16xf32>
    %49 = arith.addf %48, %38 : vector<16x16xf32>
    %cst_18 = arith.constant dense<0xFF800000> : vector<16xf32>
    %50 = vector.multi_reduction <maximumf>, %49, %cst_18 [1] : vector<16x16xf32> to vector<16xf32>
    %51 = vector.shape_cast %50 : vector<16xf32> to vector<16x1xf32>
    %52 = vector.broadcast %51 : vector<16x1xf32> to vector<16x16xf32>
    %53 = arith.subf %49, %52 : vector<16x16xf32>
    %54 = math.exp %53 : vector<16x16xf32>
    %cst_19 = arith.constant dense<0.000000e+00> : vector<16xf32>
    %55 = vector.multi_reduction <add>, %54, %cst_19 [1] : vector<16x16xf32> to vector<16xf32>
    %56 = vector.shape_cast %55 : vector<16xf32> to vector<16x1xf32>
    %cst_20 = arith.constant 1.000000e+00 : f32
    %57 = vector.broadcast %cst_20 : f32 to vector<16x1xf32>
    %58 = arith.divf %57, %56 : vector<16x1xf32>
    %cst_21 = arith.constant dense<0.000000e+00> : vector<16x8xf32>
    %59 = tpu.matmul %54, %47, %cst_21 {dimension_numbers = #tpu.dot_dimension_numbers<[1], [0], [0], [1], [0, 0, 1, 1], [], []>} : vector<16x16xf32>, vector<16x8xf32>, vector<16x8xf32> -> vector<16x8xf32>
    %60 = vector.broadcast %58 : vector<16x1xf32> to vector<16x8xf32>
    %61 = arith.mulf %59, %60 : vector<16x8xf32>
    %c0_22 = arith.constant 0 : index
    %c0_23 = arith.constant 0 : index
    %c0_24 = arith.constant 0 : index
    %62 = vector.load %arg2[%c0_22, %c0_23, %c0_24] : memref<8x8x32xf32, #tpu.memory_space<vmem>>, vector<1x8x32xf32>
    %63 = vector.shape_cast %62 : vector<1x8x32xf32> to vector<8x32xf32>
    %cst_25 = arith.constant dense<0.000000e+00> : vector<16x32xf32>
    %64 = tpu.matmul %61, %63, %cst_25 {dimension_numbers = #tpu.dot_dimension_numbers<[1], [0], [0], [1], [0, 0, 1, 1], [], []>} : vector<16x8xf32>, vector<8x32xf32>, vector<16x32xf32> -> vector<16x32xf32>
    %65 = vector.extract_strided_slice %44 {offsets = [0, 8], sizes = [16, 8], strides = [1, 1]} : vector<16x96xf32> to vector<16x8xf32>
    %66 = vector.extract_strided_slice %44 {offsets = [0, 40], sizes = [16, 8], strides = [1, 1]} : vector<16x96xf32> to vector<16x8xf32>
    %67 = vector.extract_strided_slice %44 {offsets = [0, 72], sizes = [16, 8], strides = [1, 1]} : vector<16x96xf32> to vector<16x8xf32>
    %cst_26 = arith.constant dense<0.000000e+00> : vector<16x16xf32>
    %68 = tpu.matmul %65, %66, %cst_26 {dimension_numbers = #tpu.dot_dimension_numbers<[1], [1], [0], [0], [0, 0, 1, 0], [], []>} : vector<16x8xf32>, vector<16x8xf32>, vector<16x16xf32> -> vector<16x16xf32>
    %69 = arith.addf %68, %38 : vector<16x16xf32>
    %cst_27 = arith.constant dense<0xFF800000> : vector<16xf32>
    %70 = vector.multi_reduction <maximumf>, %69, %cst_27 [1] : vector<16x16xf32> to vector<16xf32>
    %71 = vector.shape_cast %70 : vector<16xf32> to vector<16x1xf32>
    %72 = vector.broadcast %71 : vector<16x1xf32> to vector<16x16xf32>
    %73 = arith.subf %69, %72 : vector<16x16xf32>
    %74 = math.exp %73 : vector<16x16xf32>
    %cst_28 = arith.constant dense<0.000000e+00> : vector<16xf32>
    %75 = vector.multi_reduction <add>, %74, %cst_28 [1] : vector<16x16xf32> to vector<16xf32>
    %76 = vector.shape_cast %75 : vector<16xf32> to vector<16x1xf32>
    %cst_29 = arith.constant 1.000000e+00 : f32
    %77 = vector.broadcast %cst_29 : f32 to vector<16x1xf32>
    %78 = arith.divf %77, %76 : vector<16x1xf32>
    %cst_30 = arith.constant dense<0.000000e+00> : vector<16x8xf32>
    %79 = tpu.matmul %74, %67, %cst_30 {dimension_numbers = #tpu.dot_dimension_numbers<[1], [0], [0], [1], [0, 0, 1, 1], [], []>} : vector<16x16xf32>, vector<16x8xf32>, vector<16x8xf32> -> vector<16x8xf32>
    %80 = vector.broadcast %78 : vector<16x1xf32> to vector<16x8xf32>
    %81 = arith.mulf %79, %80 : vector<16x8xf32>
    %c1 = arith.constant 1 : index
    %c0_31 = arith.constant 0 : index
    %c0_32 = arith.constant 0 : index
    %82 = vector.load %arg2[%c1, %c0_31, %c0_32] : memref<8x8x32xf32, #tpu.memory_space<vmem>>, vector<1x8x32xf32>
    %83 = vector.shape_cast %82 : vector<1x8x32xf32> to vector<8x32xf32>
    %cst_33 = arith.constant dense<0.000000e+00> : vector<16x32xf32>
    %84 = tpu.matmul %81, %83, %cst_33 {dimension_numbers = #tpu.dot_dimension_numbers<[1], [0], [0], [1], [0, 0, 1, 1], [], []>} : vector<16x8xf32>, vector<8x32xf32>, vector<16x32xf32> -> vector<16x32xf32>
    %85 = arith.addf %64, %84 : vector<16x32xf32>
    %86 = vector.extract_strided_slice %44 {offsets = [0, 16], sizes = [16, 8], strides = [1, 1]} : vector<16x96xf32> to vector<16x8xf32>
    %87 = vector.extract_strided_slice %44 {offsets = [0, 48], sizes = [16, 8], strides = [1, 1]} : vector<16x96xf32> to vector<16x8xf32>
    %88 = vector.extract_strided_slice %44 {offsets = [0, 80], sizes = [16, 8], strides = [1, 1]} : vector<16x96xf32> to vector<16x8xf32>
    %cst_34 = arith.constant dense<0.000000e+00> : vector<16x16xf32>
    %89 = tpu.matmul %86, %87, %cst_34 {dimension_numbers = #tpu.dot_dimension_numbers<[1], [1], [0], [0], [0, 0, 1, 0], [], []>} : vector<16x8xf32>, vector<16x8xf32>, vector<16x16xf32> -> vector<16x16xf32>
    %90 = arith.addf %89, %38 : vector<16x16xf32>
    %cst_35 = arith.constant dense<0xFF800000> : vector<16xf32>
    %91 = vector.multi_reduction <maximumf>, %90, %cst_35 [1] : vector<16x16xf32> to vector<16xf32>
    %92 = vector.shape_cast %91 : vector<16xf32> to vector<16x1xf32>
    %93 = vector.broadcast %92 : vector<16x1xf32> to vector<16x16xf32>
    %94 = arith.subf %90, %93 : vector<16x16xf32>
    %95 = math.exp %94 : vector<16x16xf32>
    %cst_36 = arith.constant dense<0.000000e+00> : vector<16xf32>
    %96 = vector.multi_reduction <add>, %95, %cst_36 [1] : vector<16x16xf32> to vector<16xf32>
    %97 = vector.shape_cast %96 : vector<16xf32> to vector<16x1xf32>
    %cst_37 = arith.constant 1.000000e+00 : f32
    %98 = vector.broadcast %cst_37 : f32 to vector<16x1xf32>
    %99 = arith.divf %98, %97 : vector<16x1xf32>
    %cst_38 = arith.constant dense<0.000000e+00> : vector<16x8xf32>
    %100 = tpu.matmul %95, %88, %cst_38 {dimension_numbers = #tpu.dot_dimension_numbers<[1], [0], [0], [1], [0, 0, 1, 1], [], []>} : vector<16x16xf32>, vector<16x8xf32>, vector<16x8xf32> -> vector<16x8xf32>
    %101 = vector.broadcast %99 : vector<16x1xf32> to vector<16x8xf32>
    %102 = arith.mulf %100, %101 : vector<16x8xf32>
    %c2 = arith.constant 2 : index
    %c0_39 = arith.constant 0 : index
    %c0_40 = arith.constant 0 : index
    %103 = vector.load %arg2[%c2, %c0_39, %c0_40] : memref<8x8x32xf32, #tpu.memory_space<vmem>>, vector<1x8x32xf32>
    %104 = vector.shape_cast %103 : vector<1x8x32xf32> to vector<8x32xf32>
    %cst_41 = arith.constant dense<0.000000e+00> : vector<16x32xf32>
    %105 = tpu.matmul %102, %104, %cst_41 {dimension_numbers = #tpu.dot_dimension_numbers<[1], [0], [0], [1], [0, 0, 1, 1], [], []>} : vector<16x8xf32>, vector<8x32xf32>, vector<16x32xf32> -> vector<16x32xf32>
    %106 = arith.addf %85, %105 : vector<16x32xf32>
    %107 = vector.extract_strided_slice %44 {offsets = [0, 24], sizes = [16, 8], strides = [1, 1]} : vector<16x96xf32> to vector<16x8xf32>
    %108 = vector.extract_strided_slice %44 {offsets = [0, 56], sizes = [16, 8], strides = [1, 1]} : vector<16x96xf32> to vector<16x8xf32>
    %109 = vector.extract_strided_slice %44 {offsets = [0, 88], sizes = [16, 8], strides = [1, 1]} : vector<16x96xf32> to vector<16x8xf32>
    %cst_42 = arith.constant dense<0.000000e+00> : vector<16x16xf32>
    %110 = tpu.matmul %107, %108, %cst_42 {dimension_numbers = #tpu.dot_dimension_numbers<[1], [1], [0], [0], [0, 0, 1, 0], [], []>} : vector<16x8xf32>, vector<16x8xf32>, vector<16x16xf32> -> vector<16x16xf32>
    %111 = arith.addf %110, %38 : vector<16x16xf32>
    %cst_43 = arith.constant dense<0xFF800000> : vector<16xf32>
    %112 = vector.multi_reduction <maximumf>, %111, %cst_43 [1] : vector<16x16xf32> to vector<16xf32>
    %113 = vector.shape_cast %112 : vector<16xf32> to vector<16x1xf32>
    %114 = vector.broadcast %113 : vector<16x1xf32> to vector<16x16xf32>
    %115 = arith.subf %111, %114 : vector<16x16xf32>
    %116 = math.exp %115 : vector<16x16xf32>
    %cst_44 = arith.constant dense<0.000000e+00> : vector<16xf32>
    %117 = vector.multi_reduction <add>, %116, %cst_44 [1] : vector<16x16xf32> to vector<16xf32>
    %118 = vector.shape_cast %117 : vector<16xf32> to vector<16x1xf32>
    %cst_45 = arith.constant 1.000000e+00 : f32
    %119 = vector.broadcast %cst_45 : f32 to vector<16x1xf32>
    %120 = arith.divf %119, %118 : vector<16x1xf32>
    %cst_46 = arith.constant dense<0.000000e+00> : vector<16x8xf32>
    %121 = tpu.matmul %116, %109, %cst_46 {dimension_numbers = #tpu.dot_dimension_numbers<[1], [0], [0], [1], [0, 0, 1, 1], [], []>} : vector<16x16xf32>, vector<16x8xf32>, vector<16x8xf32> -> vector<16x8xf32>
    %122 = vector.broadcast %120 : vector<16x1xf32> to vector<16x8xf32>
    %123 = arith.mulf %121, %122 : vector<16x8xf32>
    %c3 = arith.constant 3 : index
    %c0_47 = arith.constant 0 : index
    %c0_48 = arith.constant 0 : index
    %124 = vector.load %arg2[%c3, %c0_47, %c0_48] : memref<8x8x32xf32, #tpu.memory_space<vmem>>, vector<1x8x32xf32>
    %125 = vector.shape_cast %124 : vector<1x8x32xf32> to vector<8x32xf32>
    %cst_49 = arith.constant dense<0.000000e+00> : vector<16x32xf32>
    %126 = tpu.matmul %123, %125, %cst_49 {dimension_numbers = #tpu.dot_dimension_numbers<[1], [0], [0], [1], [0, 0, 1, 1], [], []>} : vector<16x8xf32>, vector<8x32xf32>, vector<16x32xf32> -> vector<16x32xf32>
    %127 = arith.addf %106, %126 : vector<16x32xf32>
    %c1_50 = arith.constant 1 : index
    %c0_51 = arith.constant 0 : index
    %128 = vector.load %arg5[%c1_50, %c0_51] : memref<18x128xf32, #tpu.memory_space<vmem>>, vector<1x32xf32>
    %129 = vector.broadcast %128 : vector<1x32xf32> to vector<16x32xf32>
    %130 = arith.addf %127, %129 : vector<16x32xf32>
    %131 = arith.addf %0, %130 : vector<16x32xf32>
    %c2_52 = arith.constant 2 : index
    %c0_53 = arith.constant 0 : index
    %132 = vector.load %arg5[%c2_52, %c0_53] : memref<18x128xf32, #tpu.memory_space<vmem>>, vector<1x32xf32>
    %c3_54 = arith.constant 3 : index
    %c0_55 = arith.constant 0 : index
    %133 = vector.load %arg5[%c3_54, %c0_55] : memref<18x128xf32, #tpu.memory_space<vmem>>, vector<1x32xf32>
    %cst_56 = arith.constant dense<0.000000e+00> : vector<16xf32>
    %134 = vector.multi_reduction <add>, %131, %cst_56 [1] : vector<16x32xf32> to vector<16xf32>
    %135 = vector.shape_cast %134 : vector<16xf32> to vector<16x1xf32>
    %cst_57 = arith.constant 3.200000e+01 : f32
    %136 = vector.broadcast %cst_57 : f32 to vector<16x1xf32>
    %137 = arith.divf %135, %136 : vector<16x1xf32>
    %138 = vector.broadcast %137 : vector<16x1xf32> to vector<16x32xf32>
    %139 = arith.subf %131, %138 : vector<16x32xf32>
    %140 = arith.mulf %139, %139 : vector<16x32xf32>
    %cst_58 = arith.constant dense<0.000000e+00> : vector<16xf32>
    %141 = vector.multi_reduction <add>, %140, %cst_58 [1] : vector<16x32xf32> to vector<16xf32>
    %142 = vector.shape_cast %141 : vector<16xf32> to vector<16x1xf32>
    %cst_59 = arith.constant 3.200000e+01 : f32
    %143 = vector.broadcast %cst_59 : f32 to vector<16x1xf32>
    %144 = arith.divf %142, %143 : vector<16x1xf32>
    %145 = vector.broadcast %137 : vector<16x1xf32> to vector<16x32xf32>
    %146 = arith.subf %131, %145 : vector<16x32xf32>
    %cst_60 = arith.constant 9.99999974E-6 : f32
    %147 = vector.broadcast %cst_60 : f32 to vector<16x1xf32>
    %148 = arith.addf %144, %147 : vector<16x1xf32>
    %149 = math.rsqrt %148 : vector<16x1xf32>
    %150 = vector.broadcast %149 : vector<16x1xf32> to vector<16x32xf32>
    %151 = arith.mulf %146, %150 : vector<16x32xf32>
    %152 = vector.broadcast %132 : vector<1x32xf32> to vector<16x32xf32>
    %153 = arith.mulf %151, %152 : vector<16x32xf32>
    %154 = vector.broadcast %133 : vector<1x32xf32> to vector<16x32xf32>
    %155 = arith.addf %153, %154 : vector<16x32xf32>
    %c0_61 = arith.constant 0 : index
    %c0_62 = arith.constant 0 : index
    %c0_63 = arith.constant 0 : index
    %156 = vector.load %arg3[%c0_61, %c0_62, %c0_63] : memref<2x32x64xf32, #tpu.memory_space<vmem>>, vector<1x32x64xf32>
    %157 = vector.shape_cast %156 : vector<1x32x64xf32> to vector<32x64xf32>
    %cst_64 = arith.constant dense<0.000000e+00> : vector<16x64xf32>
    %158 = tpu.matmul %155, %157, %cst_64 {dimension_numbers = #tpu.dot_dimension_numbers<[1], [0], [0], [1], [0, 0, 1, 1], [], []>} : vector<16x32xf32>, vector<32x64xf32>, vector<16x64xf32> -> vector<16x64xf32>
    %c4 = arith.constant 4 : index
    %c0_65 = arith.constant 0 : index
    %159 = vector.load %arg5[%c4, %c0_65] : memref<18x128xf32, #tpu.memory_space<vmem>>, vector<1x64xf32>
    %160 = vector.broadcast %159 : vector<1x64xf32> to vector<16x64xf32>
    %161 = arith.addf %158, %160 : vector<16x64xf32>
    %cst_66 = arith.constant 0.000000e+00 : f32
    %162 = vector.broadcast %cst_66 : f32 to vector<16x64xf32>
    %163 = arith.maximumf %161, %162 : vector<16x64xf32>
    %c0_67 = arith.constant 0 : index
    %c0_68 = arith.constant 0 : index
    %c0_69 = arith.constant 0 : index
    %164 = vector.load %arg4[%c0_67, %c0_68, %c0_69] : memref<2x64x32xf32, #tpu.memory_space<vmem>>, vector<1x64x32xf32>
    %165 = vector.shape_cast %164 : vector<1x64x32xf32> to vector<64x32xf32>
    %cst_70 = arith.constant dense<0.000000e+00> : vector<16x32xf32>
    %166 = tpu.matmul %163, %165, %cst_70 {dimension_numbers = #tpu.dot_dimension_numbers<[1], [0], [0], [1], [0, 0, 1, 1], [], []>} : vector<16x64xf32>, vector<64x32xf32>, vector<16x32xf32> -> vector<16x32xf32>
    %c5 = arith.constant 5 : index
    %c0_71 = arith.constant 0 : index
    %167 = vector.load %arg5[%c5, %c0_71] : memref<18x128xf32, #tpu.memory_space<vmem>>, vector<1x32xf32>
    %168 = vector.broadcast %167 : vector<1x32xf32> to vector<16x32xf32>
    %169 = arith.addf %166, %168 : vector<16x32xf32>
    %170 = arith.addf %155, %169 : vector<16x32xf32>
    %c6 = arith.constant 6 : index
    %c0_72 = arith.constant 0 : index
    %171 = vector.load %arg5[%c6, %c0_72] : memref<18x128xf32, #tpu.memory_space<vmem>>, vector<1x32xf32>
    %c7 = arith.constant 7 : index
    %c0_73 = arith.constant 0 : index
    %172 = vector.load %arg5[%c7, %c0_73] : memref<18x128xf32, #tpu.memory_space<vmem>>, vector<1x32xf32>
    %cst_74 = arith.constant dense<0.000000e+00> : vector<16xf32>
    %173 = vector.multi_reduction <add>, %170, %cst_74 [1] : vector<16x32xf32> to vector<16xf32>
    %174 = vector.shape_cast %173 : vector<16xf32> to vector<16x1xf32>
    %cst_75 = arith.constant 3.200000e+01 : f32
    %175 = vector.broadcast %cst_75 : f32 to vector<16x1xf32>
    %176 = arith.divf %174, %175 : vector<16x1xf32>
    %177 = vector.broadcast %176 : vector<16x1xf32> to vector<16x32xf32>
    %178 = arith.subf %170, %177 : vector<16x32xf32>
    %179 = arith.mulf %178, %178 : vector<16x32xf32>
    %cst_76 = arith.constant dense<0.000000e+00> : vector<16xf32>
    %180 = vector.multi_reduction <add>, %179, %cst_76 [1] : vector<16x32xf32> to vector<16xf32>
    %181 = vector.shape_cast %180 : vector<16xf32> to vector<16x1xf32>
    %cst_77 = arith.constant 3.200000e+01 : f32
    %182 = vector.broadcast %cst_77 : f32 to vector<16x1xf32>
    %183 = arith.divf %181, %182 : vector<16x1xf32>
    %184 = vector.broadcast %176 : vector<16x1xf32> to vector<16x32xf32>
    %185 = arith.subf %170, %184 : vector<16x32xf32>
    %cst_78 = arith.constant 9.99999974E-6 : f32
    %186 = vector.broadcast %cst_78 : f32 to vector<16x1xf32>
    %187 = arith.addf %183, %186 : vector<16x1xf32>
    %188 = math.rsqrt %187 : vector<16x1xf32>
    %189 = vector.broadcast %188 : vector<16x1xf32> to vector<16x32xf32>
    %190 = arith.mulf %185, %189 : vector<16x32xf32>
    %191 = vector.broadcast %171 : vector<1x32xf32> to vector<16x32xf32>
    %192 = arith.mulf %190, %191 : vector<16x32xf32>
    %193 = vector.broadcast %172 : vector<1x32xf32> to vector<16x32xf32>
    %194 = arith.addf %192, %193 : vector<16x32xf32>
    %c1_79 = arith.constant 1 : index
    %c0_80 = arith.constant 0 : index
    %c0_81 = arith.constant 0 : index
    %195 = vector.load %arg1[%c1_79, %c0_80, %c0_81] : memref<2x32x96xf32, #tpu.memory_space<vmem>>, vector<1x32x96xf32>
    %196 = vector.shape_cast %195 : vector<1x32x96xf32> to vector<32x96xf32>
    %cst_82 = arith.constant dense<0.000000e+00> : vector<16x96xf32>
    %197 = tpu.matmul %194, %196, %cst_82 {dimension_numbers = #tpu.dot_dimension_numbers<[1], [0], [0], [1], [0, 0, 1, 1], [], []>} : vector<16x32xf32>, vector<32x96xf32>, vector<16x96xf32> -> vector<16x96xf32>
    %c8 = arith.constant 8 : index
    %c0_83 = arith.constant 0 : index
    %198 = vector.load %arg5[%c8, %c0_83] : memref<18x128xf32, #tpu.memory_space<vmem>>, vector<1x96xf32>
    %199 = vector.broadcast %198 : vector<1x96xf32> to vector<16x96xf32>
    %200 = arith.addf %197, %199 : vector<16x96xf32>
    %201 = vector.extract_strided_slice %200 {offsets = [0, 0], sizes = [16, 8], strides = [1, 1]} : vector<16x96xf32> to vector<16x8xf32>
    %202 = vector.extract_strided_slice %200 {offsets = [0, 32], sizes = [16, 8], strides = [1, 1]} : vector<16x96xf32> to vector<16x8xf32>
    %203 = vector.extract_strided_slice %200 {offsets = [0, 64], sizes = [16, 8], strides = [1, 1]} : vector<16x96xf32> to vector<16x8xf32>
    %cst_84 = arith.constant dense<0.000000e+00> : vector<16x16xf32>
    %204 = tpu.matmul %201, %202, %cst_84 {dimension_numbers = #tpu.dot_dimension_numbers<[1], [1], [0], [0], [0, 0, 1, 0], [], []>} : vector<16x8xf32>, vector<16x8xf32>, vector<16x16xf32> -> vector<16x16xf32>
    %205 = arith.addf %204, %38 : vector<16x16xf32>
    %cst_85 = arith.constant dense<0xFF800000> : vector<16xf32>
    %206 = vector.multi_reduction <maximumf>, %205, %cst_85 [1] : vector<16x16xf32> to vector<16xf32>
    %207 = vector.shape_cast %206 : vector<16xf32> to vector<16x1xf32>
    %208 = vector.broadcast %207 : vector<16x1xf32> to vector<16x16xf32>
    %209 = arith.subf %205, %208 : vector<16x16xf32>
    %210 = math.exp %209 : vector<16x16xf32>
    %cst_86 = arith.constant dense<0.000000e+00> : vector<16xf32>
    %211 = vector.multi_reduction <add>, %210, %cst_86 [1] : vector<16x16xf32> to vector<16xf32>
    %212 = vector.shape_cast %211 : vector<16xf32> to vector<16x1xf32>
    %cst_87 = arith.constant 1.000000e+00 : f32
    %213 = vector.broadcast %cst_87 : f32 to vector<16x1xf32>
    %214 = arith.divf %213, %212 : vector<16x1xf32>
    %cst_88 = arith.constant dense<0.000000e+00> : vector<16x8xf32>
    %215 = tpu.matmul %210, %203, %cst_88 {dimension_numbers = #tpu.dot_dimension_numbers<[1], [0], [0], [1], [0, 0, 1, 1], [], []>} : vector<16x16xf32>, vector<16x8xf32>, vector<16x8xf32> -> vector<16x8xf32>
    %216 = vector.broadcast %214 : vector<16x1xf32> to vector<16x8xf32>
    %217 = arith.mulf %215, %216 : vector<16x8xf32>
    %c4_89 = arith.constant 4 : index
    %c0_90 = arith.constant 0 : index
    %c0_91 = arith.constant 0 : index
    %218 = vector.load %arg2[%c4_89, %c0_90, %c0_91] : memref<8x8x32xf32, #tpu.memory_space<vmem>>, vector<1x8x32xf32>
    %219 = vector.shape_cast %218 : vector<1x8x32xf32> to vector<8x32xf32>
    %cst_92 = arith.constant dense<0.000000e+00> : vector<16x32xf32>
    %220 = tpu.matmul %217, %219, %cst_92 {dimension_numbers = #tpu.dot_dimension_numbers<[1], [0], [0], [1], [0, 0, 1, 1], [], []>} : vector<16x8xf32>, vector<8x32xf32>, vector<16x32xf32> -> vector<16x32xf32>
    %221 = vector.extract_strided_slice %200 {offsets = [0, 8], sizes = [16, 8], strides = [1, 1]} : vector<16x96xf32> to vector<16x8xf32>
    %222 = vector.extract_strided_slice %200 {offsets = [0, 40], sizes = [16, 8], strides = [1, 1]} : vector<16x96xf32> to vector<16x8xf32>
    %223 = vector.extract_strided_slice %200 {offsets = [0, 72], sizes = [16, 8], strides = [1, 1]} : vector<16x96xf32> to vector<16x8xf32>
    %cst_93 = arith.constant dense<0.000000e+00> : vector<16x16xf32>
    %224 = tpu.matmul %221, %222, %cst_93 {dimension_numbers = #tpu.dot_dimension_numbers<[1], [1], [0], [0], [0, 0, 1, 0], [], []>} : vector<16x8xf32>, vector<16x8xf32>, vector<16x16xf32> -> vector<16x16xf32>
    %225 = arith.addf %224, %38 : vector<16x16xf32>
    %cst_94 = arith.constant dense<0xFF800000> : vector<16xf32>
    %226 = vector.multi_reduction <maximumf>, %225, %cst_94 [1] : vector<16x16xf32> to vector<16xf32>
    %227 = vector.shape_cast %226 : vector<16xf32> to vector<16x1xf32>
    %228 = vector.broadcast %227 : vector<16x1xf32> to vector<16x16xf32>
    %229 = arith.subf %225, %228 : vector<16x16xf32>
    %230 = math.exp %229 : vector<16x16xf32>
    %cst_95 = arith.constant dense<0.000000e+00> : vector<16xf32>
    %231 = vector.multi_reduction <add>, %230, %cst_95 [1] : vector<16x16xf32> to vector<16xf32>
    %232 = vector.shape_cast %231 : vector<16xf32> to vector<16x1xf32>
    %cst_96 = arith.constant 1.000000e+00 : f32
    %233 = vector.broadcast %cst_96 : f32 to vector<16x1xf32>
    %234 = arith.divf %233, %232 : vector<16x1xf32>
    %cst_97 = arith.constant dense<0.000000e+00> : vector<16x8xf32>
    %235 = tpu.matmul %230, %223, %cst_97 {dimension_numbers = #tpu.dot_dimension_numbers<[1], [0], [0], [1], [0, 0, 1, 1], [], []>} : vector<16x16xf32>, vector<16x8xf32>, vector<16x8xf32> -> vector<16x8xf32>
    %236 = vector.broadcast %234 : vector<16x1xf32> to vector<16x8xf32>
    %237 = arith.mulf %235, %236 : vector<16x8xf32>
    %c5_98 = arith.constant 5 : index
    %c0_99 = arith.constant 0 : index
    %c0_100 = arith.constant 0 : index
    %238 = vector.load %arg2[%c5_98, %c0_99, %c0_100] : memref<8x8x32xf32, #tpu.memory_space<vmem>>, vector<1x8x32xf32>
    %239 = vector.shape_cast %238 : vector<1x8x32xf32> to vector<8x32xf32>
    %cst_101 = arith.constant dense<0.000000e+00> : vector<16x32xf32>
    %240 = tpu.matmul %237, %239, %cst_101 {dimension_numbers = #tpu.dot_dimension_numbers<[1], [0], [0], [1], [0, 0, 1, 1], [], []>} : vector<16x8xf32>, vector<8x32xf32>, vector<16x32xf32> -> vector<16x32xf32>
    %241 = arith.addf %220, %240 : vector<16x32xf32>
    %242 = vector.extract_strided_slice %200 {offsets = [0, 16], sizes = [16, 8], strides = [1, 1]} : vector<16x96xf32> to vector<16x8xf32>
    %243 = vector.extract_strided_slice %200 {offsets = [0, 48], sizes = [16, 8], strides = [1, 1]} : vector<16x96xf32> to vector<16x8xf32>
    %244 = vector.extract_strided_slice %200 {offsets = [0, 80], sizes = [16, 8], strides = [1, 1]} : vector<16x96xf32> to vector<16x8xf32>
    %cst_102 = arith.constant dense<0.000000e+00> : vector<16x16xf32>
    %245 = tpu.matmul %242, %243, %cst_102 {dimension_numbers = #tpu.dot_dimension_numbers<[1], [1], [0], [0], [0, 0, 1, 0], [], []>} : vector<16x8xf32>, vector<16x8xf32>, vector<16x16xf32> -> vector<16x16xf32>
    %246 = arith.addf %245, %38 : vector<16x16xf32>
    %cst_103 = arith.constant dense<0xFF800000> : vector<16xf32>
    %247 = vector.multi_reduction <maximumf>, %246, %cst_103 [1] : vector<16x16xf32> to vector<16xf32>
    %248 = vector.shape_cast %247 : vector<16xf32> to vector<16x1xf32>
    %249 = vector.broadcast %248 : vector<16x1xf32> to vector<16x16xf32>
    %250 = arith.subf %246, %249 : vector<16x16xf32>
    %251 = math.exp %250 : vector<16x16xf32>
    %cst_104 = arith.constant dense<0.000000e+00> : vector<16xf32>
    %252 = vector.multi_reduction <add>, %251, %cst_104 [1] : vector<16x16xf32> to vector<16xf32>
    %253 = vector.shape_cast %252 : vector<16xf32> to vector<16x1xf32>
    %cst_105 = arith.constant 1.000000e+00 : f32
    %254 = vector.broadcast %cst_105 : f32 to vector<16x1xf32>
    %255 = arith.divf %254, %253 : vector<16x1xf32>
    %cst_106 = arith.constant dense<0.000000e+00> : vector<16x8xf32>
    %256 = tpu.matmul %251, %244, %cst_106 {dimension_numbers = #tpu.dot_dimension_numbers<[1], [0], [0], [1], [0, 0, 1, 1], [], []>} : vector<16x16xf32>, vector<16x8xf32>, vector<16x8xf32> -> vector<16x8xf32>
    %257 = vector.broadcast %255 : vector<16x1xf32> to vector<16x8xf32>
    %258 = arith.mulf %256, %257 : vector<16x8xf32>
    %c6_107 = arith.constant 6 : index
    %c0_108 = arith.constant 0 : index
    %c0_109 = arith.constant 0 : index
    %259 = vector.load %arg2[%c6_107, %c0_108, %c0_109] : memref<8x8x32xf32, #tpu.memory_space<vmem>>, vector<1x8x32xf32>
    %260 = vector.shape_cast %259 : vector<1x8x32xf32> to vector<8x32xf32>
    %cst_110 = arith.constant dense<0.000000e+00> : vector<16x32xf32>
    %261 = tpu.matmul %258, %260, %cst_110 {dimension_numbers = #tpu.dot_dimension_numbers<[1], [0], [0], [1], [0, 0, 1, 1], [], []>} : vector<16x8xf32>, vector<8x32xf32>, vector<16x32xf32> -> vector<16x32xf32>
    %262 = arith.addf %241, %261 : vector<16x32xf32>
    %263 = vector.extract_strided_slice %200 {offsets = [0, 24], sizes = [16, 8], strides = [1, 1]} : vector<16x96xf32> to vector<16x8xf32>
    %264 = vector.extract_strided_slice %200 {offsets = [0, 56], sizes = [16, 8], strides = [1, 1]} : vector<16x96xf32> to vector<16x8xf32>
    %265 = vector.extract_strided_slice %200 {offsets = [0, 88], sizes = [16, 8], strides = [1, 1]} : vector<16x96xf32> to vector<16x8xf32>
    %cst_111 = arith.constant dense<0.000000e+00> : vector<16x16xf32>
    %266 = tpu.matmul %263, %264, %cst_111 {dimension_numbers = #tpu.dot_dimension_numbers<[1], [1], [0], [0], [0, 0, 1, 0], [], []>} : vector<16x8xf32>, vector<16x8xf32>, vector<16x16xf32> -> vector<16x16xf32>
    %267 = arith.addf %266, %38 : vector<16x16xf32>
    %cst_112 = arith.constant dense<0xFF800000> : vector<16xf32>
    %268 = vector.multi_reduction <maximumf>, %267, %cst_112 [1] : vector<16x16xf32> to vector<16xf32>
    %269 = vector.shape_cast %268 : vector<16xf32> to vector<16x1xf32>
    %270 = vector.broadcast %269 : vector<16x1xf32> to vector<16x16xf32>
    %271 = arith.subf %267, %270 : vector<16x16xf32>
    %272 = math.exp %271 : vector<16x16xf32>
    %cst_113 = arith.constant dense<0.000000e+00> : vector<16xf32>
    %273 = vector.multi_reduction <add>, %272, %cst_113 [1] : vector<16x16xf32> to vector<16xf32>
    %274 = vector.shape_cast %273 : vector<16xf32> to vector<16x1xf32>
    %cst_114 = arith.constant 1.000000e+00 : f32
    %275 = vector.broadcast %cst_114 : f32 to vector<16x1xf32>
    %276 = arith.divf %275, %274 : vector<16x1xf32>
    %cst_115 = arith.constant dense<0.000000e+00> : vector<16x8xf32>
    %277 = tpu.matmul %272, %265, %cst_115 {dimension_numbers = #tpu.dot_dimension_numbers<[1], [0], [0], [1], [0, 0, 1, 1], [], []>} : vector<16x16xf32>, vector<16x8xf32>, vector<16x8xf32> -> vector<16x8xf32>
    %278 = vector.broadcast %276 : vector<16x1xf32> to vector<16x8xf32>
    %279 = arith.mulf %277, %278 : vector<16x8xf32>
    %c7_116 = arith.constant 7 : index
    %c0_117 = arith.constant 0 : index
    %c0_118 = arith.constant 0 : index
    %280 = vector.load %arg2[%c7_116, %c0_117, %c0_118] : memref<8x8x32xf32, #tpu.memory_space<vmem>>, vector<1x8x32xf32>
    %281 = vector.shape_cast %280 : vector<1x8x32xf32> to vector<8x32xf32>
    %cst_119 = arith.constant dense<0.000000e+00> : vector<16x32xf32>
    %282 = tpu.matmul %279, %281, %cst_119 {dimension_numbers = #tpu.dot_dimension_numbers<[1], [0], [0], [1], [0, 0, 1, 1], [], []>} : vector<16x8xf32>, vector<8x32xf32>, vector<16x32xf32> -> vector<16x32xf32>
    %283 = arith.addf %262, %282 : vector<16x32xf32>
    %c9 = arith.constant 9 : index
    %c0_120 = arith.constant 0 : index
    %284 = vector.load %arg5[%c9, %c0_120] : memref<18x128xf32, #tpu.memory_space<vmem>>, vector<1x32xf32>
    %285 = vector.broadcast %284 : vector<1x32xf32> to vector<16x32xf32>
    %286 = arith.addf %283, %285 : vector<16x32xf32>
    %287 = arith.addf %194, %286 : vector<16x32xf32>
    %c10 = arith.constant 10 : index
    %c0_121 = arith.constant 0 : index
    %288 = vector.load %arg5[%c10, %c0_121] : memref<18x128xf32, #tpu.memory_space<vmem>>, vector<1x32xf32>
    %c11 = arith.constant 11 : index
    %c0_122 = arith.constant 0 : index
    %289 = vector.load %arg5[%c11, %c0_122] : memref<18x128xf32, #tpu.memory_space<vmem>>, vector<1x32xf32>
    %cst_123 = arith.constant dense<0.000000e+00> : vector<16xf32>
    %290 = vector.multi_reduction <add>, %287, %cst_123 [1] : vector<16x32xf32> to vector<16xf32>
    %291 = vector.shape_cast %290 : vector<16xf32> to vector<16x1xf32>
    %cst_124 = arith.constant 3.200000e+01 : f32
    %292 = vector.broadcast %cst_124 : f32 to vector<16x1xf32>
    %293 = arith.divf %291, %292 : vector<16x1xf32>
    %294 = vector.broadcast %293 : vector<16x1xf32> to vector<16x32xf32>
    %295 = arith.subf %287, %294 : vector<16x32xf32>
    %296 = arith.mulf %295, %295 : vector<16x32xf32>
    %cst_125 = arith.constant dense<0.000000e+00> : vector<16xf32>
    %297 = vector.multi_reduction <add>, %296, %cst_125 [1] : vector<16x32xf32> to vector<16xf32>
    %298 = vector.shape_cast %297 : vector<16xf32> to vector<16x1xf32>
    %cst_126 = arith.constant 3.200000e+01 : f32
    %299 = vector.broadcast %cst_126 : f32 to vector<16x1xf32>
    %300 = arith.divf %298, %299 : vector<16x1xf32>
    %301 = vector.broadcast %293 : vector<16x1xf32> to vector<16x32xf32>
    %302 = arith.subf %287, %301 : vector<16x32xf32>
    %cst_127 = arith.constant 9.99999974E-6 : f32
    %303 = vector.broadcast %cst_127 : f32 to vector<16x1xf32>
    %304 = arith.addf %300, %303 : vector<16x1xf32>
    %305 = math.rsqrt %304 : vector<16x1xf32>
    %306 = vector.broadcast %305 : vector<16x1xf32> to vector<16x32xf32>
    %307 = arith.mulf %302, %306 : vector<16x32xf32>
    %308 = vector.broadcast %288 : vector<1x32xf32> to vector<16x32xf32>
    %309 = arith.mulf %307, %308 : vector<16x32xf32>
    %310 = vector.broadcast %289 : vector<1x32xf32> to vector<16x32xf32>
    %311 = arith.addf %309, %310 : vector<16x32xf32>
    %c1_128 = arith.constant 1 : index
    %c0_129 = arith.constant 0 : index
    %c0_130 = arith.constant 0 : index
    %312 = vector.load %arg3[%c1_128, %c0_129, %c0_130] : memref<2x32x64xf32, #tpu.memory_space<vmem>>, vector<1x32x64xf32>
    %313 = vector.shape_cast %312 : vector<1x32x64xf32> to vector<32x64xf32>
    %cst_131 = arith.constant dense<0.000000e+00> : vector<16x64xf32>
    %314 = tpu.matmul %311, %313, %cst_131 {dimension_numbers = #tpu.dot_dimension_numbers<[1], [0], [0], [1], [0, 0, 1, 1], [], []>} : vector<16x32xf32>, vector<32x64xf32>, vector<16x64xf32> -> vector<16x64xf32>
    %c12 = arith.constant 12 : index
    %c0_132 = arith.constant 0 : index
    %315 = vector.load %arg5[%c12, %c0_132] : memref<18x128xf32, #tpu.memory_space<vmem>>, vector<1x64xf32>
    %316 = vector.broadcast %315 : vector<1x64xf32> to vector<16x64xf32>
    %317 = arith.addf %314, %316 : vector<16x64xf32>
    %cst_133 = arith.constant 0.000000e+00 : f32
    %318 = vector.broadcast %cst_133 : f32 to vector<16x64xf32>
    %319 = arith.maximumf %317, %318 : vector<16x64xf32>
    %c1_134 = arith.constant 1 : index
    %c0_135 = arith.constant 0 : index
    %c0_136 = arith.constant 0 : index
    %320 = vector.load %arg4[%c1_134, %c0_135, %c0_136] : memref<2x64x32xf32, #tpu.memory_space<vmem>>, vector<1x64x32xf32>
    %321 = vector.shape_cast %320 : vector<1x64x32xf32> to vector<64x32xf32>
    %cst_137 = arith.constant dense<0.000000e+00> : vector<16x32xf32>
    %322 = tpu.matmul %319, %321, %cst_137 {dimension_numbers = #tpu.dot_dimension_numbers<[1], [0], [0], [1], [0, 0, 1, 1], [], []>} : vector<16x64xf32>, vector<64x32xf32>, vector<16x32xf32> -> vector<16x32xf32>
    %c13 = arith.constant 13 : index
    %c0_138 = arith.constant 0 : index
    %323 = vector.load %arg5[%c13, %c0_138] : memref<18x128xf32, #tpu.memory_space<vmem>>, vector<1x32xf32>
    %324 = vector.broadcast %323 : vector<1x32xf32> to vector<16x32xf32>
    %325 = arith.addf %322, %324 : vector<16x32xf32>
    %326 = arith.addf %311, %325 : vector<16x32xf32>
    %c14 = arith.constant 14 : index
    %c0_139 = arith.constant 0 : index
    %327 = vector.load %arg5[%c14, %c0_139] : memref<18x128xf32, #tpu.memory_space<vmem>>, vector<1x32xf32>
    %c15 = arith.constant 15 : index
    %c0_140 = arith.constant 0 : index
    %328 = vector.load %arg5[%c15, %c0_140] : memref<18x128xf32, #tpu.memory_space<vmem>>, vector<1x32xf32>
    %cst_141 = arith.constant dense<0.000000e+00> : vector<16xf32>
    %329 = vector.multi_reduction <add>, %326, %cst_141 [1] : vector<16x32xf32> to vector<16xf32>
    %330 = vector.shape_cast %329 : vector<16xf32> to vector<16x1xf32>
    %cst_142 = arith.constant 3.200000e+01 : f32
    %331 = vector.broadcast %cst_142 : f32 to vector<16x1xf32>
    %332 = arith.divf %330, %331 : vector<16x1xf32>
    %333 = vector.broadcast %332 : vector<16x1xf32> to vector<16x32xf32>
    %334 = arith.subf %326, %333 : vector<16x32xf32>
    %335 = arith.mulf %334, %334 : vector<16x32xf32>
    %cst_143 = arith.constant dense<0.000000e+00> : vector<16xf32>
    %336 = vector.multi_reduction <add>, %335, %cst_143 [1] : vector<16x32xf32> to vector<16xf32>
    %337 = vector.shape_cast %336 : vector<16xf32> to vector<16x1xf32>
    %cst_144 = arith.constant 3.200000e+01 : f32
    %338 = vector.broadcast %cst_144 : f32 to vector<16x1xf32>
    %339 = arith.divf %337, %338 : vector<16x1xf32>
    %340 = vector.broadcast %332 : vector<16x1xf32> to vector<16x32xf32>
    %341 = arith.subf %326, %340 : vector<16x32xf32>
    %cst_145 = arith.constant 9.99999974E-6 : f32
    %342 = vector.broadcast %cst_145 : f32 to vector<16x1xf32>
    %343 = arith.addf %339, %342 : vector<16x1xf32>
    %344 = math.rsqrt %343 : vector<16x1xf32>
    %345 = vector.broadcast %344 : vector<16x1xf32> to vector<16x32xf32>
    %346 = arith.mulf %341, %345 : vector<16x32xf32>
    %347 = vector.broadcast %327 : vector<1x32xf32> to vector<16x32xf32>
    %348 = arith.mulf %346, %347 : vector<16x32xf32>
    %349 = vector.broadcast %328 : vector<1x32xf32> to vector<16x32xf32>
    %350 = arith.addf %348, %349 : vector<16x32xf32>
    %c16 = arith.constant 16 : index
    %c0_146 = arith.constant 0 : index
    %351 = vector.load %arg5[%c16, %c0_146] : memref<18x128xf32, #tpu.memory_space<vmem>>, vector<1x32xf32>
    %c17 = arith.constant 17 : index
    %c0_147 = arith.constant 0 : index
    %352 = vector.load %arg5[%c17, %c0_147] : memref<18x128xf32, #tpu.memory_space<vmem>>, vector<1x32xf32>
    %cst_148 = arith.constant dense<0.000000e+00> : vector<16xf32>
    %353 = vector.multi_reduction <add>, %350, %cst_148 [1] : vector<16x32xf32> to vector<16xf32>
    %354 = vector.shape_cast %353 : vector<16xf32> to vector<16x1xf32>
    %cst_149 = arith.constant 3.200000e+01 : f32
    %355 = vector.broadcast %cst_149 : f32 to vector<16x1xf32>
    %356 = arith.divf %354, %355 : vector<16x1xf32>
    %357 = vector.broadcast %356 : vector<16x1xf32> to vector<16x32xf32>
    %358 = arith.subf %350, %357 : vector<16x32xf32>
    %359 = arith.mulf %358, %358 : vector<16x32xf32>
    %cst_150 = arith.constant dense<0.000000e+00> : vector<16xf32>
    %360 = vector.multi_reduction <add>, %359, %cst_150 [1] : vector<16x32xf32> to vector<16xf32>
    %361 = vector.shape_cast %360 : vector<16xf32> to vector<16x1xf32>
    %cst_151 = arith.constant 3.200000e+01 : f32
    %362 = vector.broadcast %cst_151 : f32 to vector<16x1xf32>
    %363 = arith.divf %361, %362 : vector<16x1xf32>
    %364 = vector.broadcast %356 : vector<16x1xf32> to vector<16x32xf32>
    %365 = arith.subf %350, %364 : vector<16x32xf32>
    %cst_152 = arith.constant 9.99999974E-6 : f32
    %366 = vector.broadcast %cst_152 : f32 to vector<16x1xf32>
    %367 = arith.addf %363, %366 : vector<16x1xf32>
    %368 = math.rsqrt %367 : vector<16x1xf32>
    %369 = vector.broadcast %368 : vector<16x1xf32> to vector<16x32xf32>
    %370 = arith.mulf %365, %369 : vector<16x32xf32>
    %371 = vector.broadcast %351 : vector<1x32xf32> to vector<16x32xf32>
    %372 = arith.mulf %370, %371 : vector<16x32xf32>
    %373 = vector.broadcast %352 : vector<1x32xf32> to vector<16x32xf32>
    %374 = arith.addf %372, %373 : vector<16x32xf32>
    %c0_153 = arith.constant 0 : index
    %c0_154 = arith.constant 0 : index
    %375 = vector.load %arg6[%c0_153, %c0_154] : memref<16x32xf32, #tpu.memory_space<vmem>>, vector<16x32xf32>
    tpu.vector_store %arg6[%c0_153, %c0_154], %374 {strides = array<i32>} : memref<16x32xf32, #tpu.memory_space<vmem>>, vector<16x32xf32>,
    return
  }
}

</mosaic_0001>

<llo_original>
// kernel: transformer_encoder_us.1
$region0: #{transformer_encoder_us.1}
  #allocation0 [shape = 'u32[]', space=smem, size = 0x4, offset = 0x4, fixed_abs, tag = 'smem constant byte address 0x4 - core index']
  #allocation1 [shape = 'u32[72,128]{1,0:T(1,128)}', space=vmem, size = 0x9000, scoped, tag = 'internal scratch']
  %s0 = inlined_call_operand.hbm [shape: f32[16,32], index: 0, kind: input, shape index: {}]
  %s1 = inlined_call_operand.vmem [shape: f32[2,32,96], index: 1, kind: input, shape index: {}]
  %s2 = inlined_call_operand.vmem [shape: f32[8,8,32], index: 2, kind: input, shape index: {}]
  %s3 = inlined_call_operand.vmem [shape: f32[2,32,64], index: 3, kind: input, shape index: {}]
  %s4 = inlined_call_operand.vmem [shape: f32[2,64,32], index: 4, kind: input, shape index: {}]
  %s5 = inlined_call_operand.hbm [shape: f32[18,128], index: 5, kind: input, shape index: {}]
  %s6 = inlined_call_operand.hbm [shape: f32[16,32], index: 6, kind: output, shape index: {}]
  %s7 = sld [smem:[#allocation0]]
  $region42: #{transformer_encoder_us.1} parent=0
    _
  %s9 = ssub.s32 1, %s7
  %s10 = scalar_select 0, %s9, %s7
  $region1: #{transformer_encoder_us.1} parent=0
    #allocation2 [shape = 'u8[8192]{0}', space=vmem, size = 0x2000, scoped, tag = 'input window, operand 0, single buffered']
    #allocation3 [shape = 's32[1]{0}', space=sflag, size = 0x4, scoped, tag = 'scoped memory for transformer_encoder_us.1']
    #allocation4 [shape = 's32[1]{0}', space=sflag, size = 0x4, scoped, tag = 'scoped memory for transformer_encoder_us.1']
    #allocation5 [shape = 'u8[12288]{0}', space=vmem, size = 0x3000, scoped, tag = 'input window, operand 5, single buffered']
    #allocation6 [shape = 's32[1]{0}', space=sflag, size = 0x4, scoped, tag = 'scoped memory for transformer_encoder_us.1']
    #allocation7 [shape = 'u8[8192]{0}', space=vmem, size = 0x2000, scoped, tag = 'output window, operand 0, single buffered']
    %11 = vsyncpa [#allocation3], 0
    %12 = vsyncpa [#allocation6], 0
    %13 = vsyncpa [#allocation4], 0
    // Predicated region
    $region2: #{transformer_encoder_us.1} parent=1 // pred_check
      _
    $region3: #{transformer_encoder_us.1} parent=1 // pred_check_branch
      %15 = sbr.rel (0) target = $region5
    $region4: #{transformer_encoder_us.1} parent=1 // pred_region
      %17 = vsyncadd [#allocation3], 0
      %s18 = sshll.u32 %s0, 4
      %s19 = int_to_ptr.hbm [resolvable:$true] %s18
      %s20 = sshll.u32 [#allocation2], 4
      %s21 = int_to_ptr.vmem [resolvable:$true] %s20
      %26 = dma.hbm_to_vmem [thread:$0]  %s19, 256, %s21, [#allocation3], 128, 128, 8
    $region5: #{transformer_encoder_us.1} parent=1 // pred_fallthru
      _
    // Predicated region
    $region6: #{transformer_encoder_us.1} parent=1 // pred_check
      _
    $region7: #{transformer_encoder_us.1} parent=1 // pred_check_branch
      %28 = sbr.rel (0) target = $region9
    $region8: #{transformer_encoder_us.1} parent=1 // pred_region
      _
    $region9: #{transformer_encoder_us.1} parent=1 // pred_fallthru
      _
    // Predicated region
    $region10: #{transformer_encoder_us.1} parent=1 // pred_check
      _
    $region11: #{transformer_encoder_us.1} parent=1 // pred_check_branch
      %30 = sbr.rel (0) target = $region13
    $region12: #{transformer_encoder_us.1} parent=1 // pred_region
      _
    $region13: #{transformer_encoder_us.1} parent=1 // pred_fallthru
      _
    // Predicated region
    $region14: #{transformer_encoder_us.1} parent=1 // pred_check
      _
    $region15: #{transformer_encoder_us.1} parent=1 // pred_check_branch
      %32 = sbr.rel (0) target = $region17
    $region16: #{transformer_encoder_us.1} parent=1 // pred_region
      _
    $region17: #{transformer_encoder_us.1} parent=1 // pred_fallthru
      _
    // Predicated region
    $region18: #{transformer_encoder_us.1} parent=1 // pred_check
      _
    $region19: #{transformer_encoder_us.1} parent=1 // pred_check_branch
      %34 = sbr.rel (0) target = $region21
    $region20: #{transformer_encoder_us.1} parent=1 // pred_region
      _
    $region21: #{transformer_encoder_us.1} parent=1 // pred_fallthru
      _
    // Predicated region
    $region22: #{transformer_encoder_us.1} parent=1 // pred_check
      _
    $region23: #{transformer_encoder_us.1} parent=1 // pred_check_branch
      %36 = sbr.rel (0) target = $region25
    $region24: #{transformer_encoder_us.1} parent=1 // pred_region
      %38 = vsyncadd [#allocation6], 0
      %s39 = sshll.u32 %s5, 4
      %s40 = int_to_ptr.hbm [resolvable:$true] %s39
      %s41 = sshll.u32 [#allocation5], 4
      %s42 = int_to_ptr.vmem [resolvable:$true] %s41
      %47 = dma.hbm_to_vmem [thread:$0]  %s40, 384, %s42, [#allocation6], 128, 128, 8
    $region25: #{transformer_encoder_us.1} parent=1 // pred_fallthru
      _
    // Predicated region
    $region26: #{transformer_encoder_us.1} parent=1 // pred_check
      _
    $region27: #{transformer_encoder_us.1} parent=1 // pred_check_branch
      %49 = sbr.rel (0) target = $region29
    $region28: #{transformer_encoder_us.1} parent=1 // pred_region
      %51 = dma.done [#allocation3], 256
    $region29: #{transformer_encoder_us.1} parent=1 // pred_fallthru
      _
    // Predicated region
    $region30: #{transformer_encoder_us.1} parent=1 // pred_check
      _
    $region31: #{transformer_encoder_us.1} parent=1 // pred_check_branch
      %53 = sbr.rel (0) target = $region33
    $region32: #{transformer_encoder_us.1} parent=1 // pred_region
      %55 = dma.done [#allocation6], 384
    $region33: #{transformer_encoder_us.1} parent=1 // pred_fallthru
      _
    %v56 = vld [vmem:[#allocation2] sm:$0xff]
    %v57 = vld [vmem:[#allocation2 + $0x8] sm:$0xff]
    %v58 = vlaneseq
    %v59 = vshrl.u32 %v58, 7
    %v60 = vadd.s32 %v59, 8
    %vm61 = vcmp.lt.s32.totalorder %v59, 0
    %v62 = vsub.s32 0, %v59
    %v63 = vsel %vm61, %v62, %v59
    %v64 = vshrl.u32 %v63, 1
    %v65 = vand.u32 %v63, 1
    %v66 = vsub.s32 0, %v65
    %v67 = vsel %vm61, %v66, %v65
    %vm68 = vcmp.lt.s32.totalorder %v60, 0
    %v69 = vsub.s32 0, %v60
    %v70 = vsel %vm68, %v69, %v60
    %v71 = vshrl.u32 %v70, 1
    %v72 = vand.u32 %v70, 1
    %v73 = vsub.s32 0, %v72
    %v74 = vsel %vm68, %v73, %v72
    %vm75 = vcmp.ne.s32.totalorder %v67, 0
    %vm76 = vcmp.ne.s32.totalorder %v74, 0
    %vm77 = vcmp.lt.s32.totalorder %v67, 0
    %vm78 = vcmp.lt.s32.totalorder %v74, 0
    %vm79 = vmand %vm77, %vm75
    %vm80 = vmand %vm78, %vm76
    %v81 = vadd.s32 %v67, 2
    %v82 = vadd.s32 %v74, 2
    %v83 = vsel %vm79, %v81, %v67
    %v84 = vsel %vm80, %v82, %v74
    %v85 = vlaneseq
    %v86 = vand.u32 %v85, 127
    %vm87 = vcmp.lt.s32.totalorder %v86, 0
    %v88 = vsub.s32 0, %v86
    %v89 = vsel %vm87, %v88, %v86
    %v90 = vshrl.u32 %v89, 1
    %v91 = vand.u32 %v89, 1
    %v92 = vsub.s32 0, %v91
    %v93 = vsel %vm87, %v92, %v91
    %vm94 = vcmp.ne.s32.totalorder %v93, 0
    %vm95 = vcmp.lt.s32.totalorder %v93, 0
    %vm96 = vmand %vm95, %vm94
    %v97 = vadd.s32 %v93, 2
    %v98 = vsel %vm96, %v97, %v93
    %vm99 = vcmp.eq.s32.totalorder %v83, %v98
    %vm100 = vcmp.eq.s32.totalorder %v84, %v98
    %v101 = vsel %vm99, 0.0, -1e+09
    %v102 = vsel %vm100, 0.0, -1e+09
    %v103 = vld [vmem:[%s1] sm:$0xff]
    %v104 = vld [vmem:[%s1 + $0x8] sm:$0xff]
    %v105 = vld [vmem:[%s1 + $0x10] sm:$0xff]
    %v106 = vld [vmem:[%s1 + $0x18] sm:$0xff]
    %v107 = vld [vmem:[#allocation5] sm:$0x1]
    %v108 = vperm.slane %v107, 0
    %vm109 = vcmask 261120
    %v111 = vsel %vm109, %v56, 0
    %v114 = vsel %vm109, %v57, 0
    %116 = vmatpush.msra.mxu0 0.0
    %117 = vmatpush.msra.mxu0 0.0
    %118 = vmatpush.msra.mxu0 0.0
    %119 = vmatpush.msra.mxu0 0.0
    %120 = vmatpush.msra.mxu0 0.0
    %121 = vmatpush.msra.mxu0 0.0
    %122 = vmatpush.msra.mxu0 0.0
    %123 = vmatpush.msra.mxu0 0.0
    %124 = vmatpush.msra.mxu0 0.0
    %125 = vmatpush.msra.mxu0 0.0
    %126 = vmatpush.msra.mxu0 0.0
    %127 = vmatpush.msra.mxu0 0.0
    %128 = vmatpush.msra.mxu0 %v106
    %129 = vmatpush.msra.mxu0 %v105
    %130 = vmatpush.msra.mxu0 %v104
    %131 = vmatpush.msra.mxu0 %v103
    %132 = vmatmul.f32.gmra.mxu0 %v111
    %v133 = vpop.f32.mrf.mxu0
    %v134 = vadd.f32 %v108, %v133
    %135 = vmatmul.f32.gmra.mxu0 %v114
    %v136 = vpop.f32.mrf.mxu0
    %v137 = vadd.f32 %v108, %v136
    %138 = vdwg.mxu0
    %141 = vrot.lane.b32.xlu0 %v134, 96
    %v142 = vpop.permute.xlu0 %141
    %143 = vrot.lane.b32.xlu0 %v137, 96
    %v144 = vpop.permute.xlu0 %143
    %vm145 = vcmask 64512
    %v146 = vsel %vm145, %v134, 0
    %v148 = vsel %vm145, %v137, 0
    %v150 = vsel %vm145, %v142, 0
    %v152 = vsel %vm145, %v144, 0
    %154 = vmatpush.xpose.msra.mxu0 0.0
    %155 = vmatpush.xpose.msra.mxu0 0.0
    %156 = vmatpush.xpose.msra.mxu0 0.0
    %157 = vmatpush.xpose.msra.mxu0 0.0
    %158 = vmatpush.xpose.msra.mxu0 0.0
    %159 = vmatpush.xpose.msra.mxu0 0.0
    %160 = vmatpush.xpose.msra.mxu0 0.0
    %161 = vmatpush.xpose.msra.mxu0 0.0
    %162 = vmatpush.xpose.msra.mxu0 0.0
    %163 = vmatpush.xpose.msra.mxu0 0.0
    %164 = vmatpush.xpose.msra.mxu0 0.0
    %165 = vmatpush.xpose.msra.mxu0 0.0
    %166 = vmatpush.xpose.msra.mxu0 0.0
    %167 = vmatpush.xpose.msra.mxu0 0.0
    %168 = vmatpush.xpose.msra.mxu0 %v152
    %169 = vmatpush.xpose.msra.mxu0 %v150
    %170 = vmatmul.f32.gmra.mxu0 %v146
    %v171 = vpop.f32.mrf.mxu0
    %v172 = vadd.f32 %v101, %v171
    %173 = vmatmul.f32.gmra.mxu0 %v148
    %v174 = vpop.f32.mrf.mxu0
    %v175 = vadd.f32 %v102, %v174
    %176 = vdwg.mxu0
    %vm177 = vcmask 130048
    %v178 = vsel %vm177, %v172, -inf
    %179 = vmax.xlane.f32.xlu0 %v178
    %v180 = vpop.xlane.xlu0 %179
    %v181 = vsel %vm177, %v175, -inf
    %182 = vmax.xlane.f32.xlu0 %v181
    %v183 = vpop.xlane.xlu0 %182
    %v184 = vsub.f32 %v172, %v180
    %v185 = vsub.f32 %v175, %v183
    %v186 = vmul.f32 %v184, 1.442695
    %v187 = vpow.pop %v186
    %v188 = vmul.f32 %v185, 1.442695
    %v189 = vpow.pop %v188
    %v190 = vsel %vm177, %v187, 0.0
    %191 = vadd.xlane.f32.xlu0 %v190
    %v192 = vpop.xlane.xlu0 %191
    %v193 = vsel %vm177, %v189, 0.0
    %194 = vadd.xlane.f32.xlu0 %v193
    %v195 = vpop.xlane.xlu0 %194
    %v196 = vrcp.pop %v192
    %v197 = vmul.f32 %v192, %v196
    %v198 = vsub.f32 1.0, %v197
    %v199 = vmul.f32 %v196, %v198
    %v200 = vadd.f32 %v196, %v199
    %vm201 = vweird.f32 %v192
    %vm202 = vweird.f32 %v196
    %vm203 = vmor %vm201, %vm202
    %v204 = vsel %vm203, %v196, %v200
    %v205 = vand.u32 2147483647, %v192
    %vm206 = vcmp.eq.f32.partialorder %v205, 8.507059e+37
    %v207 = vand.u32 %v192, 2147483648
    %v208 = vor.u32 1.1754944e-38, %v207
    %v209 = vsel %vm206, %v208, %v204
    %v210 = vmul.f32 1.0, %v209
    %v211 = vrcp.pop %v195
    %v212 = vmul.f32 %v195, %v211
    %v213 = vsub.f32 1.0, %v212
    %v214 = vmul.f32 %v211, %v213
    %v215 = vadd.f32 %v211, %v214
    %vm216 = vweird.f32 %v195
    %vm217 = vweird.f32 %v211
    %vm218 = vmor %vm216, %vm217
    %v219 = vsel %vm218, %v211, %v215
    %v220 = vand.u32 2147483647, %v195
    %vm221 = vcmp.eq.f32.partialorder %v220, 8.507059e+37
    %v222 = vand.u32 %v195, 2147483648
    %v223 = vor.u32 1.1754944e-38, %v222
    %v224 = vsel %vm221, %v223, %v219
    %v225 = vmul.f32 1.0, %v224
    %226 = vrot.lane.b32.xlu0 %v134, 64
    %v227 = vpop.permute.xlu0 %226
    %228 = vrot.lane.b32.xlu0 %v137, 64
    %v229 = vpop.permute.xlu0 %228
    %v233 = vsel %vm177, %v187, 0
    %v236 = vsel %vm177, %v189, 0
    %238 = vmatpush.msra.mxu0 0.0
    %239 = vmatpush.msra.mxu0 0.0
    %240 = vmatpush.msra.mxu0 0.0
    %241 = vmatpush.msra.mxu0 0.0
    %242 = vmatpush.msra.mxu0 0.0
    %243 = vmatpush.msra.mxu0 0.0
    %244 = vmatpush.msra.mxu0 0.0
    %245 = vmatpush.msra.mxu0 0.0
    %246 = vmatpush.msra.mxu0 0.0
    %247 = vmatpush.msra.mxu0 0.0
    %248 = vmatpush.msra.mxu0 0.0
    %249 = vmatpush.msra.mxu0 0.0
    %250 = vmatpush.msra.mxu0 0.0
    %251 = vmatpush.msra.mxu0 0.0
    %252 = vmatpush.msra.mxu0 %v229
    %253 = vmatpush.msra.mxu0 %v227
    %254 = vmatmul.f32.gmra.mxu0 %v233
    %v255 = vpop.f32.mrf.mxu0
    %v256 = vadd.f32 0.0, %v255
    %257 = vmatmul.f32.gmra.mxu0 %v236
    %v258 = vpop.f32.mrf.mxu0
    %v259 = vadd.f32 0.0, %v258
    %260 = vdwg.mxu0
    %v261 = vmul.f32 %v256, %v210
    %v262 = vmul.f32 %v259, %v225
    %v263 = vld [vmem:[%s2] sm:$0xff]
    %264 = vrot.lane.b32.xlu0 %v134, 120
    %v265 = vpop.permute.xlu0 %264
    %266 = vrot.lane.b32.xlu0 %v137, 120
    %v267 = vpop.permute.xlu0 %266
    %268 = vrot.lane.b32.xlu0 %v134, 88
    %v269 = vpop.permute.xlu0 %268
    %270 = vrot.lane.b32.xlu0 %v137, 88
    %v271 = vpop.permute.xlu0 %270
    %v272 = vsel %vm145, %v265, 0
    %v274 = vsel %vm145, %v267, 0
    %v276 = vsel %vm145, %v269, 0
    %v278 = vsel %vm145, %v271, 0
    %280 = vmatpush.xpose.msra.mxu0 0.0
    %281 = vmatpush.xpose.msra.mxu0 0.0
    %282 = vmatpush.xpose.msra.mxu0 0.0
    %283 = vmatpush.xpose.msra.mxu0 0.0
    %284 = vmatpush.xpose.msra.mxu0 0.0
    %285 = vmatpush.xpose.msra.mxu0 0.0
    %286 = vmatpush.xpose.msra.mxu0 0.0
    %287 = vmatpush.xpose.msra.mxu0 0.0
    %288 = vmatpush.xpose.msra.mxu0 0.0
    %289 = vmatpush.xpose.msra.mxu0 0.0
    %290 = vmatpush.xpose.msra.mxu0 0.0
    %291 = vmatpush.xpose.msra.mxu0 0.0
    %292 = vmatpush.xpose.msra.mxu0 0.0
    %293 = vmatpush.xpose.msra.mxu0 0.0
    %294 = vmatpush.xpose.msra.mxu0 %v278
    %295 = vmatpush.xpose.msra.mxu0 %v276
    %296 = vmatmul.f32.gmra.mxu0 %v272
    %v297 = vpop.f32.mrf.mxu0
    %v298 = vadd.f32 %v101, %v297
    %299 = vmatmul.f32.gmra.mxu0 %v274
    %v300 = vpop.f32.mrf.mxu0
    %v301 = vadd.f32 %v102, %v300
    %302 = vdwg.mxu0
    %v303 = vsel %vm177, %v298, -inf
    %304 = vmax.xlane.f32.xlu0 %v303
    %v305 = vpop.xlane.xlu0 %304
    %v306 = vsel %vm177, %v301, -inf
    %307 = vmax.xlane.f32.xlu0 %v306
    %v308 = vpop.xlane.xlu0 %307
    %v309 = vsub.f32 %v298, %v305
    %v310 = vsub.f32 %v301, %v308
    %v311 = vmul.f32 %v309, 1.442695
    %v312 = vpow.pop %v311
    %v313 = vmul.f32 %v310, 1.442695
    %v314 = vpow.pop %v313
    %v315 = vsel %vm177, %v312, 0.0
    %316 = vadd.xlane.f32.xlu0 %v315
    %v317 = vpop.xlane.xlu0 %316
    %v318 = vsel %vm177, %v314, 0.0
    %319 = vadd.xlane.f32.xlu0 %v318
    %v320 = vpop.xlane.xlu0 %319
    %v321 = vrcp.pop %v317
    %v322 = vmul.f32 %v317, %v321
    %v323 = vsub.f32 1.0, %v322
    %v324 = vmul.f32 %v321, %v323
    %v325 = vadd.f32 %v321, %v324
    %vm326 = vweird.f32 %v317
    %vm327 = vweird.f32 %v321
    %vm328 = vmor %vm326, %vm327
    %v329 = vsel %vm328, %v321, %v325
    %v330 = vand.u32 2147483647, %v317
    %vm331 = vcmp.eq.f32.partialorder %v330, 8.507059e+37
    %v332 = vand.u32 %v317, 2147483648
    %v333 = vor.u32 1.1754944e-38, %v332
    %v334 = vsel %vm331, %v333, %v329
    %v335 = vmul.f32 1.0, %v334
    %v336 = vrcp.pop %v320
    %v337 = vmul.f32 %v320, %v336
    %v338 = vsub.f32 1.0, %v337
    %v339 = vmul.f32 %v336, %v338
    %v340 = vadd.f32 %v336, %v339
    %vm341 = vweird.f32 %v320
    %vm342 = vweird.f32 %v336
    %vm343 = vmor %vm341, %vm342
    %v344 = vsel %vm343, %v336, %v340
    %v345 = vand.u32 2147483647, %v320
    %vm346 = vcmp.eq.f32.partialorder %v345, 8.507059e+37
    %v347 = vand.u32 %v320, 2147483648
    %v348 = vor.u32 1.1754944e-38, %v347
    %v349 = vsel %vm346, %v348, %v344
    %v350 = vmul.f32 1.0, %v349
    %351 = vrot.lane.b32.xlu0 %v134, 56
    %v352 = vpop.permute.xlu0 %351
    %353 = vrot.lane.b32.xlu0 %v137, 56
    %v354 = vpop.permute.xlu0 %353
    %v358 = vsel %vm177, %v312, 0
    %v361 = vsel %vm177, %v314, 0
    %363 = vmatpush.msra.mxu0 0.0
    %364 = vmatpush.msra.mxu0 0.0
    %365 = vmatpush.msra.mxu0 0.0
    %366 = vmatpush.msra.mxu0 0.0
    %367 = vmatpush.msra.mxu0 0.0
    %368 = vmatpush.msra.mxu0 0.0
    %369 = vmatpush.msra.mxu0 0.0
    %370 = vmatpush.msra.mxu0 0.0
    %371 = vmatpush.msra.mxu0 0.0
    %372 = vmatpush.msra.mxu0 0.0
    %373 = vmatpush.msra.mxu0 0.0
    %374 = vmatpush.msra.mxu0 0.0
    %375 = vmatpush.msra.mxu0 0.0
    %376 = vmatpush.msra.mxu0 0.0
    %377 = vmatpush.msra.mxu0 %v354
    %378 = vmatpush.msra.mxu0 %v352
    %379 = vmatmul.f32.gmra.mxu0 %v358
    %v380 = vpop.f32.mrf.mxu0
    %v381 = vadd.f32 0.0, %v380
    %382 = vmatmul.f32.gmra.mxu0 %v361
    %v383 = vpop.f32.mrf.mxu0
    %v384 = vadd.f32 0.0, %v383
    %385 = vdwg.mxu0
    %v386 = vmul.f32 %v381, %v335
    %v387 = vmul.f32 %v384, %v350
    %s388 = scalar_lea.vmem %s2, 8
    %v389 = vld [vmem:[%s388] sm:$0xff]
    %v391 = vsel %vm145, %v386, 0
    %v394 = vsel %vm145, %v387, 0
    %396 = vmatpush.msra.mxu0 0.0
    %397 = vmatpush.msra.mxu0 0.0
    %398 = vmatpush.msra.mxu0 0.0
    %399 = vmatpush.msra.mxu0 0.0
    %400 = vmatpush.msra.mxu0 0.0
    %401 = vmatpush.msra.mxu0 0.0
    %402 = vmatpush.msra.mxu0 0.0
    %403 = vmatpush.msra.mxu0 0.0
    %404 = vmatpush.msra.mxu0 0.0
    %405 = vmatpush.msra.mxu0 0.0
    %406 = vmatpush.msra.mxu0 0.0
    %407 = vmatpush.msra.mxu0 0.0
    %408 = vmatpush.msra.mxu0 0.0
    %409 = vmatpush.msra.mxu0 0.0
    %410 = vmatpush.msra.mxu0 0.0
    %411 = vmatpush.msra.mxu0 %v389
    %412 = vmatmul.f32.gmra.mxu0 %v391
    %v413 = vpop.f32.mrf.mxu0
    %v414 = vadd.f32 0.0, %v413
    %415 = vmatmul.f32.gmra.mxu0 %v394
    %v416 = vpop.f32.mrf.mxu0
    %v417 = vadd.f32 0.0, %v416
    %418 = vdwg.mxu0
    %v420 = vsel %vm145, %v261, 0
    %v423 = vsel %vm145, %v262, 0
    %425 = vmatpush.msra.mxu0 0.0
    %426 = vmatpush.msra.mxu0 0.0
    %427 = vmatpush.msra.mxu0 0.0
    %428 = vmatpush.msra.mxu0 0.0
    %429 = vmatpush.msra.mxu0 0.0
    %430 = vmatpush.msra.mxu0 0.0
    %431 = vmatpush.msra.mxu0 0.0
    %432 = vmatpush.msra.mxu0 0.0
    %433 = vmatpush.msra.mxu0 0.0
    %434 = vmatpush.msra.mxu0 0.0
    %435 = vmatpush.msra.mxu0 0.0
    %436 = vmatpush.msra.mxu0 0.0
    %437 = vmatpush.msra.mxu0 0.0
    %438 = vmatpush.msra.mxu0 0.0
    %439 = vmatpush.msra.mxu0 0.0
    %440 = vmatpush.msra.mxu0 %v263
    %441 = vmatmul.f32.gmra.mxu0 %v420
    %v442 = vpop.f32.mrf.mxu0
    %v443 = vadd.f32 %v414, %v442
    %444 = vmatmul.f32.gmra.mxu0 %v423
    %v445 = vpop.f32.mrf.mxu0
    %v446 = vadd.f32 %v417, %v445
    %447 = vdwg.mxu0
    %448 = vrot.lane.b32.xlu0 %v134, 112
    %v449 = vpop.permute.xlu0 %448
    %450 = vrot.lane.b32.xlu0 %v137, 112
    %v451 = vpop.permute.xlu0 %450
    %452 = vrot.lane.b32.xlu0 %v134, 80
    %v453 = vpop.permute.xlu0 %452
    %454 = vrot.lane.b32.xlu0 %v137, 80
    %v455 = vpop.permute.xlu0 %454
    %v456 = vsel %vm145, %v449, 0
    %v458 = vsel %vm145, %v451, 0
    %v460 = vsel %vm145, %v453, 0
    %v462 = vsel %vm145, %v455, 0
    %464 = vmatpush.xpose.msra.mxu0 0.0
    %465 = vmatpush.xpose.msra.mxu0 0.0
    %466 = vmatpush.xpose.msra.mxu0 0.0
    %467 = vmatpush.xpose.msra.mxu0 0.0
    %468 = vmatpush.xpose.msra.mxu0 0.0
    %469 = vmatpush.xpose.msra.mxu0 0.0
    %470 = vmatpush.xpose.msra.mxu0 0.0
    %471 = vmatpush.xpose.msra.mxu0 0.0
    %472 = vmatpush.xpose.msra.mxu0 0.0
    %473 = vmatpush.xpose.msra.mxu0 0.0
    %474 = vmatpush.xpose.msra.mxu0 0.0
    %475 = vmatpush.xpose.msra.mxu0 0.0
    %476 = vmatpush.xpose.msra.mxu0 0.0
    %477 = vmatpush.xpose.msra.mxu0 0.0
    %478 = vmatpush.xpose.msra.mxu0 %v462
    %479 = vmatpush.xpose.msra.mxu0 %v460
    %480 = vmatmul.f32.gmra.mxu0 %v456
    %v481 = vpop.f32.mrf.mxu0
    %v482 = vadd.f32 %v101, %v481
    %483 = vmatmul.f32.gmra.mxu0 %v458
    %v484 = vpop.f32.mrf.mxu0
    %v485 = vadd.f32 %v102, %v484
    %486 = vdwg.mxu0
    %v487 = vsel %vm177, %v482, -inf
    %488 = vmax.xlane.f32.xlu0 %v487
    %v489 = vpop.xlane.xlu0 %488
    %v490 = vsel %vm177, %v485, -inf
    %491 = vmax.xlane.f32.xlu0 %v490
    %v492 = vpop.xlane.xlu0 %491
    %v493 = vsub.f32 %v482, %v489
    %v494 = vsub.f32 %v485, %v492
    %v495 = vmul.f32 %v493, 1.442695
    %v496 = vpow.pop %v495
    %v497 = vmul.f32 %v494, 1.442695
    %v498 = vpow.pop %v497
    %v499 = vsel %vm177, %v496, 0.0
    %500 = vadd.xlane.f32.xlu0 %v499
    %v501 = vpop.xlane.xlu0 %500
    %v502 = vsel %vm177, %v498, 0.0
    %503 = vadd.xlane.f32.xlu0 %v502
    %v504 = vpop.xlane.xlu0 %503
    %v505 = vrcp.pop %v501
    %v506 = vmul.f32 %v501, %v505
    %v507 = vsub.f32 1.0, %v506
    %v508 = vmul.f32 %v505, %v507
    %v509 = vadd.f32 %v505, %v508
    %vm510 = vweird.f32 %v501
    %vm511 = vweird.f32 %v505
    %vm512 = vmor %vm510, %vm511
    %v513 = vsel %vm512, %v505, %v509
    %v514 = vand.u32 2147483647, %v501
    %vm515 = vcmp.eq.f32.partialorder %v514, 8.507059e+37
    %v516 = vand.u32 %v501, 2147483648
    %v517 = vor.u32 1.1754944e-38, %v516
    %v518 = vsel %vm515, %v517, %v513
    %v519 = vmul.f32 1.0, %v518
    %v520 = vrcp.pop %v504
    %v521 = vmul.f32 %v504, %v520
    %v522 = vsub.f32 1.0, %v521
    %v523 = vmul.f32 %v520, %v522
    %v524 = vadd.f32 %v520, %v523
    %vm525 = vweird.f32 %v504
    %vm526 = vweird.f32 %v520
    %vm527 = vmor %vm525, %vm526
    %v528 = vsel %vm527, %v520, %v524
    %v529 = vand.u32 2147483647, %v504
    %vm530 = vcmp.eq.f32.partialorder %v529, 8.507059e+37
    %v531 = vand.u32 %v504, 2147483648
    %v532 = vor.u32 1.1754944e-38, %v531
    %v533 = vsel %vm530, %v532, %v528
    %v534 = vmul.f32 1.0, %v533
    %535 = vrot.lane.b32.xlu0 %v134, 48
    %v536 = vpop.permute.xlu0 %535
    %537 = vrot.lane.b32.xlu0 %v137, 48
    %v538 = vpop.permute.xlu0 %537
    %v542 = vsel %vm177, %v496, 0
    %v545 = vsel %vm177, %v498, 0
    %547 = vmatpush.msra.mxu0 0.0
    %548 = vmatpush.msra.mxu0 0.0
    %549 = vmatpush.msra.mxu0 0.0
    %550 = vmatpush.msra.mxu0 0.0
    %551 = vmatpush.msra.mxu0 0.0
    %552 = vmatpush.msra.mxu0 0.0
    %553 = vmatpush.msra.mxu0 0.0
    %554 = vmatpush.msra.mxu0 0.0
    %555 = vmatpush.msra.mxu0 0.0
    %556 = vmatpush.msra.mxu0 0.0
    %557 = vmatpush.msra.mxu0 0.0
    %558 = vmatpush.msra.mxu0 0.0
    %559 = vmatpush.msra.mxu0 0.0
    %560 = vmatpush.msra.mxu0 0.0
    %561 = vmatpush.msra.mxu0 %v538
    %562 = vmatpush.msra.mxu0 %v536
    %563 = vmatmul.f32.gmra.mxu0 %v542
    %v564 = vpop.f32.mrf.mxu0
    %v565 = vadd.f32 0.0, %v564
    %566 = vmatmul.f32.gmra.mxu0 %v545
    %v567 = vpop.f32.mrf.mxu0
    %v568 = vadd.f32 0.0, %v567
    %569 = vdwg.mxu0
    %v570 = vmul.f32 %v565, %v519
    %v571 = vmul.f32 %v568, %v534
    %s572 = scalar_lea.vmem %s2, 16
    %v573 = vld [vmem:[%s572] sm:$0xff]
    %v575 = vsel %vm145, %v570, 0
    %v578 = vsel %vm145, %v571, 0
    %580 = vmatpush.msra.mxu0 0.0
    %581 = vmatpush.msra.mxu0 0.0
    %582 = vmatpush.msra.mxu0 0.0
    %583 = vmatpush.msra.mxu0 0.0
    %584 = vmatpush.msra.mxu0 0.0
    %585 = vmatpush.msra.mxu0 0.0
    %586 = vmatpush.msra.mxu0 0.0
    %587 = vmatpush.msra.mxu0 0.0
    %588 = vmatpush.msra.mxu0 0.0
    %589 = vmatpush.msra.mxu0 0.0
    %590 = vmatpush.msra.mxu0 0.0
    %591 = vmatpush.msra.mxu0 0.0
    %592 = vmatpush.msra.mxu0 0.0
    %593 = vmatpush.msra.mxu0 0.0
    %594 = vmatpush.msra.mxu0 0.0
    %595 = vmatpush.msra.mxu0 %v573
    %596 = vmatmul.f32.gmra.mxu0 %v575
    %v597 = vpop.f32.mrf.mxu0
    %v598 = vadd.f32 0.0, %v597
    %599 = vmatmul.f32.gmra.mxu0 %v578
    %v600 = vpop.f32.mrf.mxu0
    %v601 = vadd.f32 0.0, %v600
    %602 = vdwg.mxu0
    %v603 = vadd.f32 %v443, %v598
    %v604 = vadd.f32 %v446, %v601
    %605 = vrot.lane.b32.xlu0 %v134, 104
    %v606 = vpop.permute.xlu0 %605
    %607 = vrot.lane.b32.xlu0 %v137, 104
    %v608 = vpop.permute.xlu0 %607
    %609 = vrot.lane.b32.xlu0 %v134, 72
    %v610 = vpop.permute.xlu0 %609
    %611 = vrot.lane.b32.xlu0 %v137, 72
    %v612 = vpop.permute.xlu0 %611
    %v613 = vsel %vm145, %v606, 0
    %v615 = vsel %vm145, %v608, 0
    %v617 = vsel %vm145, %v610, 0
    %v619 = vsel %vm145, %v612, 0
    %621 = vmatpush.xpose.msra.mxu0 0.0
    %622 = vmatpush.xpose.msra.mxu0 0.0
    %623 = vmatpush.xpose.msra.mxu0 0.0
    %624 = vmatpush.xpose.msra.mxu0 0.0
    %625 = vmatpush.xpose.msra.mxu0 0.0
    %626 = vmatpush.xpose.msra.mxu0 0.0
    %627 = vmatpush.xpose.msra.mxu0 0.0
    %628 = vmatpush.xpose.msra.mxu0 0.0
    %629 = vmatpush.xpose.msra.mxu0 0.0
    %630 = vmatpush.xpose.msra.mxu0 0.0
    %631 = vmatpush.xpose.msra.mxu0 0.0
    %632 = vmatpush.xpose.msra.mxu0 0.0
    %633 = vmatpush.xpose.msra.mxu0 0.0
    %634 = vmatpush.xpose.msra.mxu0 0.0
    %635 = vmatpush.xpose.msra.mxu0 %v619
    %636 = vmatpush.xpose.msra.mxu0 %v617
    %637 = vmatmul.f32.gmra.mxu0 %v613
    %v638 = vpop.f32.mrf.mxu0
    %v639 = vadd.f32 %v101, %v638
    %640 = vmatmul.f32.gmra.mxu0 %v615
    %v641 = vpop.f32.mrf.mxu0
    %v642 = vadd.f32 %v102, %v641
    %643 = vdwg.mxu0
    %v644 = vsel %vm177, %v639, -inf
    %645 = vmax.xlane.f32.xlu0 %v644
    %v646 = vpop.xlane.xlu0 %645
    %v647 = vsel %vm177, %v642, -inf
    %648 = vmax.xlane.f32.xlu0 %v647
    %v649 = vpop.xlane.xlu0 %648
    %v650 = vsub.f32 %v639, %v646
    %v651 = vsub.f32 %v642, %v649
    %v652 = vmul.f32 %v650, 1.442695
    %v653 = vpow.pop %v652
    %v654 = vmul.f32 %v651, 1.442695
    %v655 = vpow.pop %v654
    %v656 = vsel %vm177, %v653, 0.0
    %657 = vadd.xlane.f32.xlu0 %v656
    %v658 = vpop.xlane.xlu0 %657
    %v659 = vsel %vm177, %v655, 0.0
    %660 = vadd.xlane.f32.xlu0 %v659
    %v661 = vpop.xlane.xlu0 %660
    %v662 = vrcp.pop %v658
    %v663 = vmul.f32 %v658, %v662
    %v664 = vsub.f32 1.0, %v663
    %v665 = vmul.f32 %v662, %v664
    %v666 = vadd.f32 %v662, %v665
    %vm667 = vweird.f32 %v658
    %vm668 = vweird.f32 %v662
    %vm669 = vmor %vm667, %vm668
    %v670 = vsel %vm669, %v662, %v666
    %v671 = vand.u32 2147483647, %v658
    %vm672 = vcmp.eq.f32.partialorder %v671, 8.507059e+37
    %v673 = vand.u32 %v658, 2147483648
    %v674 = vor.u32 1.1754944e-38, %v673
    %v675 = vsel %vm672, %v674, %v670
    %v676 = vmul.f32 1.0, %v675
    %v677 = vrcp.pop %v661
    %v678 = vmul.f32 %v661, %v677
    %v679 = vsub.f32 1.0, %v678
    %v680 = vmul.f32 %v677, %v679
    %v681 = vadd.f32 %v677, %v680
    %vm682 = vweird.f32 %v661
    %vm683 = vweird.f32 %v677
    %vm684 = vmor %vm682, %vm683
    %v685 = vsel %vm684, %v677, %v681
    %v686 = vand.u32 2147483647, %v661
    %vm687 = vcmp.eq.f32.partialorder %v686, 8.507059e+37
    %v688 = vand.u32 %v661, 2147483648
    %v689 = vor.u32 1.1754944e-38, %v688
    %v690 = vsel %vm687, %v689, %v685
    %v691 = vmul.f32 1.0, %v690
    %692 = vrot.lane.b32.xlu0 %v134, 40
    %v693 = vpop.permute.xlu0 %692
    %694 = vrot.lane.b32.xlu0 %v137, 40
    %v695 = vpop.permute.xlu0 %694
    %v699 = vsel %vm177, %v653, 0
    %v702 = vsel %vm177, %v655, 0
    %704 = vmatpush.msra.mxu0 0.0
    %705 = vmatpush.msra.mxu0 0.0
    %706 = vmatpush.msra.mxu0 0.0
    %707 = vmatpush.msra.mxu0 0.0
    %708 = vmatpush.msra.mxu0 0.0
    %709 = vmatpush.msra.mxu0 0.0
    %710 = vmatpush.msra.mxu0 0.0
    %711 = vmatpush.msra.mxu0 0.0
    %712 = vmatpush.msra.mxu0 0.0
    %713 = vmatpush.msra.mxu0 0.0
    %714 = vmatpush.msra.mxu0 0.0
    %715 = vmatpush.msra.mxu0 0.0
    %716 = vmatpush.msra.mxu0 0.0
    %717 = vmatpush.msra.mxu0 0.0
    %718 = vmatpush.msra.mxu0 %v695
    %719 = vmatpush.msra.mxu0 %v693
    %720 = vmatmul.f32.gmra.mxu0 %v699
    %v721 = vpop.f32.mrf.mxu0
    %v722 = vadd.f32 0.0, %v721
    %723 = vmatmul.f32.gmra.mxu0 %v702
    %v724 = vpop.f32.mrf.mxu0
    %v725 = vadd.f32 0.0, %v724
    %726 = vdwg.mxu0
    %v727 = vmul.f32 %v722, %v676
    %v728 = vmul.f32 %v725, %v691
    %s729 = scalar_lea.vmem %s2, 24
    %v730 = vld [vmem:[%s729] sm:$0xff]
    %v732 = vsel %vm145, %v727, 0
    %v735 = vsel %vm145, %v728, 0
    %737 = vmatpush.msra.mxu0 0.0
    %738 = vmatpush.msra.mxu0 0.0
    %739 = vmatpush.msra.mxu0 0.0
    %740 = vmatpush.msra.mxu0 0.0
    %741 = vmatpush.msra.mxu0 0.0
    %742 = vmatpush.msra.mxu0 0.0
    %743 = vmatpush.msra.mxu0 0.0
    %744 = vmatpush.msra.mxu0 0.0
    %745 = vmatpush.msra.mxu0 0.0
    %746 = vmatpush.msra.mxu0 0.0
    %747 = vmatpush.msra.mxu0 0.0
    %748 = vmatpush.msra.mxu0 0.0
    %749 = vmatpush.msra.mxu0 0.0
    %750 = vmatpush.msra.mxu0 0.0
    %751 = vmatpush.msra.mxu0 0.0
    %752 = vmatpush.msra.mxu0 %v730
    %753 = vmatmul.f32.gmra.mxu0 %v732
    %v754 = vpop.f32.mrf.mxu0
    %v755 = vadd.f32 0.0, %v754
    %756 = vmatmul.f32.gmra.mxu0 %v735
    %v757 = vpop.f32.mrf.mxu0
    %v758 = vadd.f32 0.0, %v757
    %759 = vdwg.mxu0
    %v760 = vadd.f32 %v603, %v755
    %v761 = vadd.f32 %v604, %v758
    %v762 = vld [vmem:[#allocation5 + $0x1] sm:$0x1]
    %v763 = vperm.slane %v762, 0
    %v764 = vadd.f32 %v760, %v763
    %v765 = vadd.f32 %v761, %v763
    %v766 = vadd.f32 %v56, %v764
    %v767 = vadd.f32 %v57, %v765
    %v768 = vld [vmem:[#allocation5 + $0x2] sm:$0x1]
    %v769 = vld [vmem:[#allocation5 + $0x3] sm:$0x1]
    %v770 = vsel %vm109, %v766, 0.0
    %771 = vadd.xlane.f32.xlu0 %v770
    %v772 = vpop.xlane.xlu0 %771
    %v773 = vsel %vm109, %v767, 0.0
    %774 = vadd.xlane.f32.xlu0 %v773
    %v775 = vpop.xlane.xlu0 %774
    %v776 = vrcp.pop 32.0
    %v777 = vmul.f32 32.0, %v776
    %v778 = vsub.f32 1.0, %v777
    %v779 = vmul.f32 %v776, %v778
    %v780 = vadd.f32 %v776, %v779
    %vm781 = vweird.f32 %v776
    %v782 = vsel %vm781, %v776, %v780
    %v783 = vmul.f32 %v772, %v782
    %v784 = vmul.f32 %v775, %v782
    %v785 = vsub.f32 %v766, %v783
    %v786 = vsub.f32 %v767, %v784
    %v787 = vmul.f32 %v785, %v785
    %v788 = vmul.f32 %v786, %v786
    %v789 = vsel %vm109, %v787, 0.0
    %790 = vadd.xlane.f32.xlu0 %v789
    %v791 = vpop.xlane.xlu0 %790
    %v792 = vsel %vm109, %v788, 0.0
    %793 = vadd.xlane.f32.xlu0 %v792
    %v794 = vpop.xlane.xlu0 %793
    %v795 = vmul.f32 %v791, %v782
    %v796 = vmul.f32 %v794, %v782
    %v797 = vadd.f32 %v795, 1e-05
    %v798 = vadd.f32 %v796, 1e-05
    %v799 = vrsqrt.pop %v797
    %v800 = vmul.f32 %v799, %v797
    %v801 = vmul.f32 %v800, %v799
    %v802 = vmul.f32 0.5, %v801
    %v803 = vsub.f32 1.5, %v802
    %v804 = vmul.f32 %v799, %v803
    %vm805 = vweird.f32 %v797
    %vm806 = vweird.f32 %v799
    %vm807 = vmor %vm805, %vm806
    %v808 = vsel %vm807, %v799, %v804
    %v809 = vrsqrt.pop %v798
    %v810 = vmul.f32 %v809, %v798
    %v811 = vmul.f32 %v810, %v809
    %v812 = vmul.f32 0.5, %v811
    %v813 = vsub.f32 1.5, %v812
    %v814 = vmul.f32 %v809, %v813
    %vm815 = vweird.f32 %v798
    %vm816 = vweird.f32 %v809
    %vm817 = vmor %vm815, %vm816
    %v818 = vsel %vm817, %v809, %v814
    %v819 = vmul.f32 %v785, %v808
    %v820 = vmul.f32 %v786, %v818
    %v821 = vperm.slane %v768, 0
    %v822 = vmul.f32 %v819, %v821
    %v823 = vmul.f32 %v820, %v821
    %v824 = vperm.slane %v769, 0
    %v825 = vadd.f32 %v822, %v824
    %v826 = vadd.f32 %v823, %v824
    %v827 = vld [vmem:[%s3] sm:$0xff]
    %v828 = vld [vmem:[%s3 + $0x8] sm:$0xff]
    %v829 = vld [vmem:[%s3 + $0x10] sm:$0xff]
    %v830 = vld [vmem:[%s3 + $0x18] sm:$0xff]
    %v831 = vld [vmem:[#allocation5 + $0x4] sm:$0x1]
    %v832 = vperm.slane %v831, 0
    %v834 = vsel %vm109, %v825, 0
    %v837 = vsel %vm109, %v826, 0
    %839 = vmatpush.msra.mxu0 0.0
    %840 = vmatpush.msra.mxu0 0.0
    %841 = vmatpush.msra.mxu0 0.0
    %842 = vmatpush.msra.mxu0 0.0
    %843 = vmatpush.msra.mxu0 0.0
    %844 = vmatpush.msra.mxu0 0.0
    %845 = vmatpush.msra.mxu0 0.0
    %846 = vmatpush.msra.mxu0 0.0
    %847 = vmatpush.msra.mxu0 0.0
    %848 = vmatpush.msra.mxu0 0.0
    %849 = vmatpush.msra.mxu0 0.0
    %850 = vmatpush.msra.mxu0 0.0
    %851 = vmatpush.msra.mxu0 %v830
    %852 = vmatpush.msra.mxu0 %v829
    %853 = vmatpush.msra.mxu0 %v828
    %854 = vmatpush.msra.mxu0 %v827
    %855 = vmatmul.f32.gmra.mxu0 %v834
    %v856 = vpop.f32.mrf.mxu0
    %v857 = vadd.f32 %v832, %v856
    %858 = vmatmul.f32.gmra.mxu0 %v837
    %v859 = vpop.f32.mrf.mxu0
    %v860 = vadd.f32 %v832, %v859
    %861 = vdwg.mxu0
    %v862 = vmax.f32 %v857, 0.0
    %v863 = vmax.f32 %v860, 0.0
    %v864 = vld [vmem:[%s4] sm:$0xff]
    %v865 = vld [vmem:[%s4 + $0x8] sm:$0xff]
    %v866 = vld [vmem:[%s4 + $0x10] sm:$0xff]
    %v867 = vld [vmem:[%s4 + $0x18] sm:$0xff]
    %v868 = vld [vmem:[%s4 + $0x20] sm:$0xff]
    %v869 = vld [vmem:[%s4 + $0x28] sm:$0xff]
    %v870 = vld [vmem:[%s4 + $0x30] sm:$0xff]
    %v871 = vld [vmem:[%s4 + $0x38] sm:$0xff]
    %v872 = vld [vmem:[#allocation5 + $0x5] sm:$0x1]
    %v873 = vperm.slane %v872, 0
    %vm874 = vcmask 523264
    %v876 = vsel %vm874, %v862, 0
    %v879 = vsel %vm874, %v863, 0
    %881 = vmatpush.msra.mxu0 0.0
    %882 = vmatpush.msra.mxu0 0.0
    %883 = vmatpush.msra.mxu0 0.0
    %884 = vmatpush.msra.mxu0 0.0
    %885 = vmatpush.msra.mxu0 0.0
    %886 = vmatpush.msra.mxu0 0.0
    %887 = vmatpush.msra.mxu0 0.0
    %888 = vmatpush.msra.mxu0 0.0
    %889 = vmatpush.msra.mxu0 %v871
    %890 = vmatpush.msra.mxu0 %v870
    %891 = vmatpush.msra.mxu0 %v869
    %892 = vmatpush.msra.mxu0 %v868
    %893 = vmatpush.msra.mxu0 %v867
    %894 = vmatpush.msra.mxu0 %v866
    %895 = vmatpush.msra.mxu0 %v865
    %896 = vmatpush.msra.mxu0 %v864
    %897 = vmatmul.f32.gmra.mxu0 %v876
    %v898 = vpop.f32.mrf.mxu0
    %v899 = vadd.f32 %v873, %v898
    %900 = vmatmul.f32.gmra.mxu0 %v879
    %v901 = vpop.f32.mrf.mxu0
    %v902 = vadd.f32 %v873, %v901
    %903 = vdwg.mxu0
    %v904 = vadd.f32 %v825, %v899
    %v905 = vadd.f32 %v826, %v902
    %v906 = vld [vmem:[#allocation5 + $0x6] sm:$0x1]
    %v907 = vld [vmem:[#allocation5 + $0x7] sm:$0x1]
    %v908 = vsel %vm109, %v904, 0.0
    %909 = vadd.xlane.f32.xlu0 %v908
    %v910 = vpop.xlane.xlu0 %909
    %v911 = vsel %vm109, %v905, 0.0
    %912 = vadd.xlane.f32.xlu0 %v911
    %v913 = vpop.xlane.xlu0 %912
    %v914 = vmul.f32 %v910, %v782
    %v915 = vmul.f32 %v913, %v782
    %v916 = vsub.f32 %v904, %v914
    %v917 = vsub.f32 %v905, %v915
    %v918 = vmul.f32 %v916, %v916
    %v919 = vmul.f32 %v917, %v917
    %v920 = vsel %vm109, %v918, 0.0
    %921 = vadd.xlane.f32.xlu0 %v920
    %v922 = vpop.xlane.xlu0 %921
    %v923 = vsel %vm109, %v919, 0.0
    %924 = vadd.xlane.f32.xlu0 %v923
    %v925 = vpop.xlane.xlu0 %924
    %v926 = vmul.f32 %v922, %v782
    %v927 = vmul.f32 %v925, %v782
    %v928 = vadd.f32 %v926, 1e-05
    %v929 = vadd.f32 %v927, 1e-05
    %v930 = vrsqrt.pop %v928
    %v931 = vmul.f32 %v930, %v928
    %v932 = vmul.f32 %v931, %v930
    %v933 = vmul.f32 0.5, %v932
    %v934 = vsub.f32 1.5, %v933
    %v935 = vmul.f32 %v930, %v934
    %vm936 = vweird.f32 %v928
    %vm937 = vweird.f32 %v930
    %vm938 = vmor %vm936, %vm937
    %v939 = vsel %vm938, %v930, %v935
    %v940 = vrsqrt.pop %v929
    %v941 = vmul.f32 %v940, %v929
    %v942 = vmul.f32 %v941, %v940
    %v943 = vmul.f32 0.5, %v942
    %v944 = vsub.f32 1.5, %v943
    %v945 = vmul.f32 %v940, %v944
    %vm946 = vweird.f32 %v929
    %vm947 = vweird.f32 %v940
    %vm948 = vmor %vm946, %vm947
    %v949 = vsel %vm948, %v940, %v945
    %v950 = vmul.f32 %v916, %v939
    %v951 = vmul.f32 %v917, %v949
    %v952 = vperm.slane %v906, 0
    %v953 = vmul.f32 %v950, %v952
    %v954 = vmul.f32 %v951, %v952
    %v955 = vperm.slane %v907, 0
    %v956 = vadd.f32 %v953, %v955
    %v957 = vadd.f32 %v954, %v955
    %s958 = scalar_lea.vmem %s1, 32
    %v959 = vld [vmem:[%s958] sm:$0xff]
    %v960 = vld [vmem:[%s958 + $0x8] sm:$0xff]
    %v961 = vld [vmem:[%s958 + $0x10] sm:$0xff]
    %v962 = vld [vmem:[%s958 + $0x18] sm:$0xff]
    %v963 = vld [vmem:[#allocation5 + $0x8] sm:$0x1]
    %v964 = vperm.slane %v963, 0
    %v966 = vsel %vm109, %v956, 0
    %v969 = vsel %vm109, %v957, 0
    %971 = vmatpush.msra.mxu0 0.0
    %972 = vmatpush.msra.mxu0 0.0
    %973 = vmatpush.msra.mxu0 0.0
    %974 = vmatpush.msra.mxu0 0.0
    %975 = vmatpush.msra.mxu0 0.0
    %976 = vmatpush.msra.mxu0 0.0
    %977 = vmatpush.msra.mxu0 0.0
    %978 = vmatpush.msra.mxu0 0.0
    %979 = vmatpush.msra.mxu0 0.0
    %980 = vmatpush.msra.mxu0 0.0
    %981 = vmatpush.msra.mxu0 0.0
    %982 = vmatpush.msra.mxu0 0.0
    %983 = vmatpush.msra.mxu0 %v962
    %984 = vmatpush.msra.mxu0 %v961
    %985 = vmatpush.msra.mxu0 %v960
    %986 = vmatpush.msra.mxu0 %v959
    %987 = vmatmul.f32.gmra.mxu0 %v966
    %v988 = vpop.f32.mrf.mxu0
    %v989 = vadd.f32 %v964, %v988
    %990 = vmatmul.f32.gmra.mxu0 %v969
    %v991 = vpop.f32.mrf.mxu0
    %v992 = vadd.f32 %v964, %v991
    %993 = vdwg.mxu0
    %996 = vrot.lane.b32.xlu0 %v989, 96
    %v997 = vpop.permute.xlu0 %996
    %998 = vrot.lane.b32.xlu0 %v992, 96
    %v999 = vpop.permute.xlu0 %998
    %v1000 = vsel %vm145, %v989, 0
    %v1002 = vsel %vm145, %v992, 0
    %v1004 = vsel %vm145, %v997, 0
    %v1006 = vsel %vm145, %v999, 0
    %1008 = vmatpush.xpose.msra.mxu0 0.0
    %1009 = vmatpush.xpose.msra.mxu0 0.0
    %1010 = vmatpush.xpose.msra.mxu0 0.0
    %1011 = vmatpush.xpose.msra.mxu0 0.0
    %1012 = vmatpush.xpose.msra.mxu0 0.0
    %1013 = vmatpush.xpose.msra.mxu0 0.0
    %1014 = vmatpush.xpose.msra.mxu0 0.0
    %1015 = vmatpush.xpose.msra.mxu0 0.0
    %1016 = vmatpush.xpose.msra.mxu0 0.0
    %1017 = vmatpush.xpose.msra.mxu0 0.0
    %1018 = vmatpush.xpose.msra.mxu0 0.0
    %1019 = vmatpush.xpose.msra.mxu0 0.0
    %1020 = vmatpush.xpose.msra.mxu0 0.0
    %1021 = vmatpush.xpose.msra.mxu0 0.0
    %1022 = vmatpush.xpose.msra.mxu0 %v1006
    %1023 = vmatpush.xpose.msra.mxu0 %v1004
    %1024 = vmatmul.f32.gmra.mxu0 %v1000
    %v1025 = vpop.f32.mrf.mxu0
    %v1026 = vadd.f32 %v101, %v1025
    %1027 = vmatmul.f32.gmra.mxu0 %v1002
    %v1028 = vpop.f32.mrf.mxu0
    %v1029 = vadd.f32 %v102, %v1028
    %1030 = vdwg.mxu0
    %v1031 = vsel %vm177, %v1026, -inf
    %1032 = vmax.xlane.f32.xlu0 %v1031
    %v1033 = vpop.xlane.xlu0 %1032
    %v1034 = vsel %vm177, %v1029, -inf
    %1035 = vmax.xlane.f32.xlu0 %v1034
    %v1036 = vpop.xlane.xlu0 %1035
    %v1037 = vsub.f32 %v1026, %v1033
    %v1038 = vsub.f32 %v1029, %v1036
    %v1039 = vmul.f32 %v1037, 1.442695
    %v1040 = vpow.pop %v1039
    %v1041 = vmul.f32 %v1038, 1.442695
    %v1042 = vpow.pop %v1041
    %v1043 = vsel %vm177, %v1040, 0.0
    %1044 = vadd.xlane.f32.xlu0 %v1043
    %v1045 = vpop.xlane.xlu0 %1044
    %v1046 = vsel %vm177, %v1042, 0.0
    %1047 = vadd.xlane.f32.xlu0 %v1046
    %v1048 = vpop.xlane.xlu0 %1047
    %v1049 = vrcp.pop %v1045
    %v1050 = vmul.f32 %v1045, %v1049
    %v1051 = vsub.f32 1.0, %v1050
    %v1052 = vmul.f32 %v1049, %v1051
    %v1053 = vadd.f32 %v1049, %v1052
    %vm1054 = vweird.f32 %v1045
    %vm1055 = vweird.f32 %v1049
    %vm1056 = vmor %vm1054, %vm1055
    %v1057 = vsel %vm1056, %v1049, %v1053
    %v1058 = vand.u32 2147483647, %v1045
    %vm1059 = vcmp.eq.f32.partialorder %v1058, 8.507059e+37
    %v1060 = vand.u32 %v1045, 2147483648
    %v1061 = vor.u32 1.1754944e-38, %v1060
    %v1062 = vsel %vm1059, %v1061, %v1057
    %v1063 = vmul.f32 1.0, %v1062
    %v1064 = vrcp.pop %v1048
    %v1065 = vmul.f32 %v1048, %v1064
    %v1066 = vsub.f32 1.0, %v1065
    %v1067 = vmul.f32 %v1064, %v1066
    %v1068 = vadd.f32 %v1064, %v1067
    %vm1069 = vweird.f32 %v1048
    %vm1070 = vweird.f32 %v1064
    %vm1071 = vmor %vm1069, %vm1070
    %v1072 = vsel %vm1071, %v1064, %v1068
    %v1073 = vand.u32 2147483647, %v1048
    %vm1074 = vcmp.eq.f32.partialorder %v1073, 8.507059e+37
    %v1075 = vand.u32 %v1048, 2147483648
    %v1076 = vor.u32 1.1754944e-38, %v1075
    %v1077 = vsel %vm1074, %v1076, %v1072
    %v1078 = vmul.f32 1.0, %v1077
    %1079 = vrot.lane.b32.xlu0 %v989, 64
    %v1080 = vpop.permute.xlu0 %1079
    %1081 = vrot.lane.b32.xlu0 %v992, 64
    %v1082 = vpop.permute.xlu0 %1081
    %v1086 = vsel %vm177, %v1040, 0
    %v1089 = vsel %vm177, %v1042, 0
    %1091 = vmatpush.msra.mxu0 0.0
    %1092 = vmatpush.msra.mxu0 0.0
    %1093 = vmatpush.msra.mxu0 0.0
    %1094 = vmatpush.msra.mxu0 0.0
    %1095 = vmatpush.msra.mxu0 0.0
    %1096 = vmatpush.msra.mxu0 0.0
    %1097 = vmatpush.msra.mxu0 0.0
    %1098 = vmatpush.msra.mxu0 0.0
    %1099 = vmatpush.msra.mxu0 0.0
    %1100 = vmatpush.msra.mxu0 0.0
    %1101 = vmatpush.msra.mxu0 0.0
    %1102 = vmatpush.msra.mxu0 0.0
    %1103 = vmatpush.msra.mxu0 0.0
    %1104 = vmatpush.msra.mxu0 0.0
    %1105 = vmatpush.msra.mxu0 %v1082
    %1106 = vmatpush.msra.mxu0 %v1080
    %1107 = vmatmul.f32.gmra.mxu0 %v1086
    %v1108 = vpop.f32.mrf.mxu0
    %v1109 = vadd.f32 0.0, %v1108
    %1110 = vmatmul.f32.gmra.mxu0 %v1089
    %v1111 = vpop.f32.mrf.mxu0
    %v1112 = vadd.f32 0.0, %v1111
    %1113 = vdwg.mxu0
    %v1114 = vmul.f32 %v1109, %v1063
    %v1115 = vmul.f32 %v1112, %v1078
    %s1116 = scalar_lea.vmem %s2, 32
    %v1117 = vld [vmem:[%s1116] sm:$0xff]
    %1118 = vrot.lane.b32.xlu0 %v989, 120
    %v1119 = vpop.permute.xlu0 %1118
    %1120 = vrot.lane.b32.xlu0 %v992, 120
    %v1121 = vpop.permute.xlu0 %1120
    %1122 = vrot.lane.b32.xlu0 %v989, 88
    %v1123 = vpop.permute.xlu0 %1122
    %1124 = vrot.lane.b32.xlu0 %v992, 88
    %v1125 = vpop.permute.xlu0 %1124
    %v1126 = vsel %vm145, %v1119, 0
    %v1128 = vsel %vm145, %v1121, 0
    %v1130 = vsel %vm145, %v1123, 0
    %v1132 = vsel %vm145, %v1125, 0
    %1134 = vmatpush.xpose.msra.mxu0 0.0
    %1135 = vmatpush.xpose.msra.mxu0 0.0
    %1136 = vmatpush.xpose.msra.mxu0 0.0
    %1137 = vmatpush.xpose.msra.mxu0 0.0
    %1138 = vmatpush.xpose.msra.mxu0 0.0
    %1139 = vmatpush.xpose.msra.mxu0 0.0
    %1140 = vmatpush.xpose.msra.mxu0 0.0
    %1141 = vmatpush.xpose.msra.mxu0 0.0
    %1142 = vmatpush.xpose.msra.mxu0 0.0
    %1143 = vmatpush.xpose.msra.mxu0 0.0
    %1144 = vmatpush.xpose.msra.mxu0 0.0
    %1145 = vmatpush.xpose.msra.mxu0 0.0
    %1146 = vmatpush.xpose.msra.mxu0 0.0
    %1147 = vmatpush.xpose.msra.mxu0 0.0
    %1148 = vmatpush.xpose.msra.mxu0 %v1132
    %1149 = vmatpush.xpose.msra.mxu0 %v1130
    %1150 = vmatmul.f32.gmra.mxu0 %v1126
    %v1151 = vpop.f32.mrf.mxu0
    %v1152 = vadd.f32 %v101, %v1151
    %1153 = vmatmul.f32.gmra.mxu0 %v1128
    %v1154 = vpop.f32.mrf.mxu0
    %v1155 = vadd.f32 %v102, %v1154
    %1156 = vdwg.mxu0
    %v1157 = vsel %vm177, %v1152, -inf
    %1158 = vmax.xlane.f32.xlu0 %v1157
    %v1159 = vpop.xlane.xlu0 %1158
    %v1160 = vsel %vm177, %v1155, -inf
    %1161 = vmax.xlane.f32.xlu0 %v1160
    %v1162 = vpop.xlane.xlu0 %1161
    %v1163 = vsub.f32 %v1152, %v1159
    %v1164 = vsub.f32 %v1155, %v1162
    %v1165 = vmul.f32 %v1163, 1.442695
    %v1166 = vpow.pop %v1165
    %v1167 = vmul.f32 %v1164, 1.442695
    %v1168 = vpow.pop %v1167
    %v1169 = vsel %vm177, %v1166, 0.0
    %1170 = vadd.xlane.f32.xlu0 %v1169
    %v1171 = vpop.xlane.xlu0 %1170
    %v1172 = vsel %vm177, %v1168, 0.0
    %1173 = vadd.xlane.f32.xlu0 %v1172
    %v1174 = vpop.xlane.xlu0 %1173
    %v1175 = vrcp.pop %v1171
    %v1176 = vmul.f32 %v1171, %v1175
    %v1177 = vsub.f32 1.0, %v1176
    %v1178 = vmul.f32 %v1175, %v1177
    %v1179 = vadd.f32 %v1175, %v1178
    %vm1180 = vweird.f32 %v1171
    %vm1181 = vweird.f32 %v1175
    %vm1182 = vmor %vm1180, %vm1181
    %v1183 = vsel %vm1182, %v1175, %v1179
    %v1184 = vand.u32 2147483647, %v1171
    %vm1185 = vcmp.eq.f32.partialorder %v1184, 8.507059e+37
    %v1186 = vand.u32 %v1171, 2147483648
    %v1187 = vor.u32 1.1754944e-38, %v1186
    %v1188 = vsel %vm1185, %v1187, %v1183
    %v1189 = vmul.f32 1.0, %v1188
    %v1190 = vrcp.pop %v1174
    %v1191 = vmul.f32 %v1174, %v1190
    %v1192 = vsub.f32 1.0, %v1191
    %v1193 = vmul.f32 %v1190, %v1192
    %v1194 = vadd.f32 %v1190, %v1193
    %vm1195 = vweird.f32 %v1174
    %vm1196 = vweird.f32 %v1190
    %vm1197 = vmor %vm1195, %vm1196
    %v1198 = vsel %vm1197, %v1190, %v1194
    %v1199 = vand.u32 2147483647, %v1174
    %vm1200 = vcmp.eq.f32.partialorder %v1199, 8.507059e+37
    %v1201 = vand.u32 %v1174, 2147483648
    %v1202 = vor.u32 1.1754944e-38, %v1201
    %v1203 = vsel %vm1200, %v1202, %v1198
    %v1204 = vmul.f32 1.0, %v1203
    %1205 = vrot.lane.b32.xlu0 %v989, 56
    %v1206 = vpop.permute.xlu0 %1205
    %1207 = vrot.lane.b32.xlu0 %v992, 56
    %v1208 = vpop.permute.xlu0 %1207
    %v1212 = vsel %vm177, %v1166, 0
    %v1215 = vsel %vm177, %v1168, 0
    %1217 = vmatpush.msra.mxu0 0.0
    %1218 = vmatpush.msra.mxu0 0.0
    %1219 = vmatpush.msra.mxu0 0.0
    %1220 = vmatpush.msra.mxu0 0.0
    %1221 = vmatpush.msra.mxu0 0.0
    %1222 = vmatpush.msra.mxu0 0.0
    %1223 = vmatpush.msra.mxu0 0.0
    %1224 = vmatpush.msra.mxu0 0.0
    %1225 = vmatpush.msra.mxu0 0.0
    %1226 = vmatpush.msra.mxu0 0.0
    %1227 = vmatpush.msra.mxu0 0.0
    %1228 = vmatpush.msra.mxu0 0.0
    %1229 = vmatpush.msra.mxu0 0.0
    %1230 = vmatpush.msra.mxu0 0.0
    %1231 = vmatpush.msra.mxu0 %v1208
    %1232 = vmatpush.msra.mxu0 %v1206
    %1233 = vmatmul.f32.gmra.mxu0 %v1212
    %v1234 = vpop.f32.mrf.mxu0
    %v1235 = vadd.f32 0.0, %v1234
    %1236 = vmatmul.f32.gmra.mxu0 %v1215
    %v1237 = vpop.f32.mrf.mxu0
    %v1238 = vadd.f32 0.0, %v1237
    %1239 = vdwg.mxu0
    %v1240 = vmul.f32 %v1235, %v1189
    %v1241 = vmul.f32 %v1238, %v1204
    %s1242 = scalar_lea.vmem %s2, 40
    %v1243 = vld [vmem:[%s1242] sm:$0xff]
    %v1245 = vsel %vm145, %v1240, 0
    %v1248 = vsel %vm145, %v1241, 0
    %1250 = vmatpush.msra.mxu0 0.0
    %1251 = vmatpush.msra.mxu0 0.0
    %1252 = vmatpush.msra.mxu0 0.0
    %1253 = vmatpush.msra.mxu0 0.0
    %1254 = vmatpush.msra.mxu0 0.0
    %1255 = vmatpush.msra.mxu0 0.0
    %1256 = vmatpush.msra.mxu0 0.0
    %1257 = vmatpush.msra.mxu0 0.0
    %1258 = vmatpush.msra.mxu0 0.0
    %1259 = vmatpush.msra.mxu0 0.0
    %1260 = vmatpush.msra.mxu0 0.0
    %1261 = vmatpush.msra.mxu0 0.0
    %1262 = vmatpush.msra.mxu0 0.0
    %1263 = vmatpush.msra.mxu0 0.0
    %1264 = vmatpush.msra.mxu0 0.0
    %1265 = vmatpush.msra.mxu0 %v1243
    %1266 = vmatmul.f32.gmra.mxu0 %v1245
    %v1267 = vpop.f32.mrf.mxu0
    %v1268 = vadd.f32 0.0, %v1267
    %1269 = vmatmul.f32.gmra.mxu0 %v1248
    %v1270 = vpop.f32.mrf.mxu0
    %v1271 = vadd.f32 0.0, %v1270
    %1272 = vdwg.mxu0
    %v1274 = vsel %vm145, %v1114, 0
    %v1277 = vsel %vm145, %v1115, 0
    %1279 = vmatpush.msra.mxu0 0.0
    %1280 = vmatpush.msra.mxu0 0.0
    %1281 = vmatpush.msra.mxu0 0.0
    %1282 = vmatpush.msra.mxu0 0.0
    %1283 = vmatpush.msra.mxu0 0.0
    %1284 = vmatpush.msra.mxu0 0.0
    %1285 = vmatpush.msra.mxu0 0.0
    %1286 = vmatpush.msra.mxu0 0.0
    %1287 = vmatpush.msra.mxu0 0.0
    %1288 = vmatpush.msra.mxu0 0.0
    %1289 = vmatpush.msra.mxu0 0.0
    %1290 = vmatpush.msra.mxu0 0.0
    %1291 = vmatpush.msra.mxu0 0.0
    %1292 = vmatpush.msra.mxu0 0.0
    %1293 = vmatpush.msra.mxu0 0.0
    %1294 = vmatpush.msra.mxu0 %v1117
    %1295 = vmatmul.f32.gmra.mxu0 %v1274
    %v1296 = vpop.f32.mrf.mxu0
    %v1297 = vadd.f32 %v1268, %v1296
    %1298 = vmatmul.f32.gmra.mxu0 %v1277
    %v1299 = vpop.f32.mrf.mxu0
    %v1300 = vadd.f32 %v1271, %v1299
    %1301 = vdwg.mxu0
    %1302 = vrot.lane.b32.xlu0 %v989, 112
    %v1303 = vpop.permute.xlu0 %1302
    %1304 = vrot.lane.b32.xlu0 %v992, 112
    %v1305 = vpop.permute.xlu0 %1304
    %1306 = vrot.lane.b32.xlu0 %v989, 80
    %v1307 = vpop.permute.xlu0 %1306
    %1308 = vrot.lane.b32.xlu0 %v992, 80
    %v1309 = vpop.permute.xlu0 %1308
    %v1310 = vsel %vm145, %v1303, 0
    %v1312 = vsel %vm145, %v1305, 0
    %v1314 = vsel %vm145, %v1307, 0
    %v1316 = vsel %vm145, %v1309, 0
    %1318 = vmatpush.xpose.msra.mxu0 0.0
    %1319 = vmatpush.xpose.msra.mxu0 0.0
    %1320 = vmatpush.xpose.msra.mxu0 0.0
    %1321 = vmatpush.xpose.msra.mxu0 0.0
    %1322 = vmatpush.xpose.msra.mxu0 0.0
    %1323 = vmatpush.xpose.msra.mxu0 0.0
    %1324 = vmatpush.xpose.msra.mxu0 0.0
    %1325 = vmatpush.xpose.msra.mxu0 0.0
    %1326 = vmatpush.xpose.msra.mxu0 0.0
    %1327 = vmatpush.xpose.msra.mxu0 0.0
    %1328 = vmatpush.xpose.msra.mxu0 0.0
    %1329 = vmatpush.xpose.msra.mxu0 0.0
    %1330 = vmatpush.xpose.msra.mxu0 0.0
    %1331 = vmatpush.xpose.msra.mxu0 0.0
    %1332 = vmatpush.xpose.msra.mxu0 %v1316
    %1333 = vmatpush.xpose.msra.mxu0 %v1314
    %1334 = vmatmul.f32.gmra.mxu0 %v1310
    %v1335 = vpop.f32.mrf.mxu0
    %v1336 = vadd.f32 %v101, %v1335
    %1337 = vmatmul.f32.gmra.mxu0 %v1312
    %v1338 = vpop.f32.mrf.mxu0
    %v1339 = vadd.f32 %v102, %v1338
    %1340 = vdwg.mxu0
    %v1341 = vsel %vm177, %v1336, -inf
    %1342 = vmax.xlane.f32.xlu0 %v1341
    %v1343 = vpop.xlane.xlu0 %1342
    %v1344 = vsel %vm177, %v1339, -inf
    %1345 = vmax.xlane.f32.xlu0 %v1344
    %v1346 = vpop.xlane.xlu0 %1345
    %v1347 = vsub.f32 %v1336, %v1343
    %v1348 = vsub.f32 %v1339, %v1346
    %v1349 = vmul.f32 %v1347, 1.442695
    %v1350 = vpow.pop %v1349
    %v1351 = vmul.f32 %v1348, 1.442695
    %v1352 = vpow.pop %v1351
    %v1353 = vsel %vm177, %v1350, 0.0
    %1354 = vadd.xlane.f32.xlu0 %v1353
    %v1355 = vpop.xlane.xlu0 %1354
    %v1356 = vsel %vm177, %v1352, 0.0
    %1357 = vadd.xlane.f32.xlu0 %v1356
    %v1358 = vpop.xlane.xlu0 %1357
    %v1359 = vrcp.pop %v1355
    %v1360 = vmul.f32 %v1355, %v1359
    %v1361 = vsub.f32 1.0, %v1360
    %v1362 = vmul.f32 %v1359, %v1361
    %v1363 = vadd.f32 %v1359, %v1362
    %vm1364 = vweird.f32 %v1355
    %vm1365 = vweird.f32 %v1359
    %vm1366 = vmor %vm1364, %vm1365
    %v1367 = vsel %vm1366, %v1359, %v1363
    %v1368 = vand.u32 2147483647, %v1355
    %vm1369 = vcmp.eq.f32.partialorder %v1368, 8.507059e+37
    %v1370 = vand.u32 %v1355, 2147483648
    %v1371 = vor.u32 1.1754944e-38, %v1370
    %v1372 = vsel %vm1369, %v1371, %v1367
    %v1373 = vmul.f32 1.0, %v1372
    %v1374 = vrcp.pop %v1358
    %v1375 = vmul.f32 %v1358, %v1374
    %v1376 = vsub.f32 1.0, %v1375
    %v1377 = vmul.f32 %v1374, %v1376
    %v1378 = vadd.f32 %v1374, %v1377
    %vm1379 = vweird.f32 %v1358
    %vm1380 = vweird.f32 %v1374
    %vm1381 = vmor %vm1379, %vm1380
    %v1382 = vsel %vm1381, %v1374, %v1378
    %v1383 = vand.u32 2147483647, %v1358
    %vm1384 = vcmp.eq.f32.partialorder %v1383, 8.507059e+37
    %v1385 = vand.u32 %v1358, 2147483648
    %v1386 = vor.u32 1.1754944e-38, %v1385
    %v1387 = vsel %vm1384, %v1386, %v1382
    %v1388 = vmul.f32 1.0, %v1387
    %1389 = vrot.lane.b32.xlu0 %v989, 48
    %v1390 = vpop.permute.xlu0 %1389
    %1391 = vrot.lane.b32.xlu0 %v992, 48
    %v1392 = vpop.permute.xlu0 %1391
    %v1396 = vsel %vm177, %v1350, 0
    %v1399 = vsel %vm177, %v1352, 0
    %1401 = vmatpush.msra.mxu0 0.0
    %1402 = vmatpush.msra.mxu0 0.0
    %1403 = vmatpush.msra.mxu0 0.0
    %1404 = vmatpush.msra.mxu0 0.0
    %1405 = vmatpush.msra.mxu0 0.0
    %1406 = vmatpush.msra.mxu0 0.0
    %1407 = vmatpush.msra.mxu0 0.0
    %1408 = vmatpush.msra.mxu0 0.0
    %1409 = vmatpush.msra.mxu0 0.0
    %1410 = vmatpush.msra.mxu0 0.0
    %1411 = vmatpush.msra.mxu0 0.0
    %1412 = vmatpush.msra.mxu0 0.0
    %1413 = vmatpush.msra.mxu0 0.0
    %1414 = vmatpush.msra.mxu0 0.0
    %1415 = vmatpush.msra.mxu0 %v1392
    %1416 = vmatpush.msra.mxu0 %v1390
    %1417 = vmatmul.f32.gmra.mxu0 %v1396
    %v1418 = vpop.f32.mrf.mxu0
    %v1419 = vadd.f32 0.0, %v1418
    %1420 = vmatmul.f32.gmra.mxu0 %v1399
    %v1421 = vpop.f32.mrf.mxu0
    %v1422 = vadd.f32 0.0, %v1421
    %1423 = vdwg.mxu0
    %v1424 = vmul.f32 %v1419, %v1373
    %v1425 = vmul.f32 %v1422, %v1388
    %s1426 = scalar_lea.vmem %s2, 48
    %v1427 = vld [vmem:[%s1426] sm:$0xff]
    %v1429 = vsel %vm145, %v1424, 0
    %v1432 = vsel %vm145, %v1425, 0
    %1434 = vmatpush.msra.mxu0 0.0
    %1435 = vmatpush.msra.mxu0 0.0
    %1436 = vmatpush.msra.mxu0 0.0
    %1437 = vmatpush.msra.mxu0 0.0
    %1438 = vmatpush.msra.mxu0 0.0
    %1439 = vmatpush.msra.mxu0 0.0
    %1440 = vmatpush.msra.mxu0 0.0
    %1441 = vmatpush.msra.mxu0 0.0
    %1442 = vmatpush.msra.mxu0 0.0
    %1443 = vmatpush.msra.mxu0 0.0
    %1444 = vmatpush.msra.mxu0 0.0
    %1445 = vmatpush.msra.mxu0 0.0
    %1446 = vmatpush.msra.mxu0 0.0
    %1447 = vmatpush.msra.mxu0 0.0
    %1448 = vmatpush.msra.mxu0 0.0
    %1449 = vmatpush.msra.mxu0 %v1427
    %1450 = vmatmul.f32.gmra.mxu0 %v1429
    %v1451 = vpop.f32.mrf.mxu0
    %v1452 = vadd.f32 0.0, %v1451
    %1453 = vmatmul.f32.gmra.mxu0 %v1432
    %v1454 = vpop.f32.mrf.mxu0
    %v1455 = vadd.f32 0.0, %v1454
    %1456 = vdwg.mxu0
    %v1457 = vadd.f32 %v1297, %v1452
    %v1458 = vadd.f32 %v1300, %v1455
    %1459 = vrot.lane.b32.xlu0 %v989, 104
    %v1460 = vpop.permute.xlu0 %1459
    %1461 = vrot.lane.b32.xlu0 %v992, 104
    %v1462 = vpop.permute.xlu0 %1461
    %1463 = vrot.lane.b32.xlu0 %v989, 72
    %v1464 = vpop.permute.xlu0 %1463
    %1465 = vrot.lane.b32.xlu0 %v992, 72
    %v1466 = vpop.permute.xlu0 %1465
    %v1467 = vsel %vm145, %v1460, 0
    %v1469 = vsel %vm145, %v1462, 0
    %v1471 = vsel %vm145, %v1464, 0
    %v1473 = vsel %vm145, %v1466, 0
    %1475 = vmatpush.xpose.msra.mxu0 0.0
    %1476 = vmatpush.xpose.msra.mxu0 0.0
    %1477 = vmatpush.xpose.msra.mxu0 0.0
    %1478 = vmatpush.xpose.msra.mxu0 0.0
    %1479 = vmatpush.xpose.msra.mxu0 0.0
    %1480 = vmatpush.xpose.msra.mxu0 0.0
    %1481 = vmatpush.xpose.msra.mxu0 0.0
    %1482 = vmatpush.xpose.msra.mxu0 0.0
    %1483 = vmatpush.xpose.msra.mxu0 0.0
    %1484 = vmatpush.xpose.msra.mxu0 0.0
    %1485 = vmatpush.xpose.msra.mxu0 0.0
    %1486 = vmatpush.xpose.msra.mxu0 0.0
    %1487 = vmatpush.xpose.msra.mxu0 0.0
    %1488 = vmatpush.xpose.msra.mxu0 0.0
    %1489 = vmatpush.xpose.msra.mxu0 %v1473
    %1490 = vmatpush.xpose.msra.mxu0 %v1471
    %1491 = vmatmul.f32.gmra.mxu0 %v1467
    %v1492 = vpop.f32.mrf.mxu0
    %v1493 = vadd.f32 %v101, %v1492
    %1494 = vmatmul.f32.gmra.mxu0 %v1469
    %v1495 = vpop.f32.mrf.mxu0
    %v1496 = vadd.f32 %v102, %v1495
    %1497 = vdwg.mxu0
    %v1498 = vsel %vm177, %v1493, -inf
    %1499 = vmax.xlane.f32.xlu0 %v1498
    %v1500 = vpop.xlane.xlu0 %1499
    %v1501 = vsel %vm177, %v1496, -inf
    %1502 = vmax.xlane.f32.xlu0 %v1501
    %v1503 = vpop.xlane.xlu0 %1502
    %v1504 = vsub.f32 %v1493, %v1500
    %v1505 = vsub.f32 %v1496, %v1503
    %v1506 = vmul.f32 %v1504, 1.442695
    %v1507 = vpow.pop %v1506
    %v1508 = vmul.f32 %v1505, 1.442695
    %v1509 = vpow.pop %v1508
    %v1510 = vsel %vm177, %v1507, 0.0
    %1511 = vadd.xlane.f32.xlu0 %v1510
    %v1512 = vpop.xlane.xlu0 %1511
    %v1513 = vsel %vm177, %v1509, 0.0
    %1514 = vadd.xlane.f32.xlu0 %v1513
    %v1515 = vpop.xlane.xlu0 %1514
    %v1516 = vrcp.pop %v1512
    %v1517 = vmul.f32 %v1512, %v1516
    %v1518 = vsub.f32 1.0, %v1517
    %v1519 = vmul.f32 %v1516, %v1518
    %v1520 = vadd.f32 %v1516, %v1519
    %vm1521 = vweird.f32 %v1512
    %vm1522 = vweird.f32 %v1516
    %vm1523 = vmor %vm1521, %vm1522
    %v1524 = vsel %vm1523, %v1516, %v1520
    %v1525 = vand.u32 2147483647, %v1512
    %vm1526 = vcmp.eq.f32.partialorder %v1525, 8.507059e+37
    %v1527 = vand.u32 %v1512, 2147483648
    %v1528 = vor.u32 1.1754944e-38, %v1527
    %v1529 = vsel %vm1526, %v1528, %v1524
    %v1530 = vmul.f32 1.0, %v1529
    %v1531 = vrcp.pop %v1515
    %v1532 = vmul.f32 %v1515, %v1531
    %v1533 = vsub.f32 1.0, %v1532
    %v1534 = vmul.f32 %v1531, %v1533
    %v1535 = vadd.f32 %v1531, %v1534
    %vm1536 = vweird.f32 %v1515
    %vm1537 = vweird.f32 %v1531
    %vm1538 = vmor %vm1536, %vm1537
    %v1539 = vsel %vm1538, %v1531, %v1535
    %v1540 = vand.u32 2147483647, %v1515
    %vm1541 = vcmp.eq.f32.partialorder %v1540, 8.507059e+37
    %v1542 = vand.u32 %v1515, 2147483648
    %v1543 = vor.u32 1.1754944e-38, %v1542
    %v1544 = vsel %vm1541, %v1543, %v1539
    %v1545 = vmul.f32 1.0, %v1544
    %1546 = vrot.lane.b32.xlu0 %v989, 40
    %v1547 = vpop.permute.xlu0 %1546
    %1548 = vrot.lane.b32.xlu0 %v992, 40
    %v1549 = vpop.permute.xlu0 %1548
    %v1553 = vsel %vm177, %v1507, 0
    %v1556 = vsel %vm177, %v1509, 0
    %1558 = vmatpush.msra.mxu0 0.0
    %1559 = vmatpush.msra.mxu0 0.0
    %1560 = vmatpush.msra.mxu0 0.0
    %1561 = vmatpush.msra.mxu0 0.0
    %1562 = vmatpush.msra.mxu0 0.0
    %1563 = vmatpush.msra.mxu0 0.0
    %1564 = vmatpush.msra.mxu0 0.0
    %1565 = vmatpush.msra.mxu0 0.0
    %1566 = vmatpush.msra.mxu0 0.0
    %1567 = vmatpush.msra.mxu0 0.0
    %1568 = vmatpush.msra.mxu0 0.0
    %1569 = vmatpush.msra.mxu0 0.0
    %1570 = vmatpush.msra.mxu0 0.0
    %1571 = vmatpush.msra.mxu0 0.0
    %1572 = vmatpush.msra.mxu0 %v1549
    %1573 = vmatpush.msra.mxu0 %v1547
    %1574 = vmatmul.f32.gmra.mxu0 %v1553
    %v1575 = vpop.f32.mrf.mxu0
    %v1576 = vadd.f32 0.0, %v1575
    %1577 = vmatmul.f32.gmra.mxu0 %v1556
    %v1578 = vpop.f32.mrf.mxu0
    %v1579 = vadd.f32 0.0, %v1578
    %1580 = vdwg.mxu0
    %v1581 = vmul.f32 %v1576, %v1530
    %v1582 = vmul.f32 %v1579, %v1545
    %s1583 = scalar_lea.vmem %s2, 56
    %v1584 = vld [vmem:[%s1583] sm:$0xff]
    %v1586 = vsel %vm145, %v1581, 0
    %v1589 = vsel %vm145, %v1582, 0
    %1591 = vmatpush.msra.mxu0 0.0
    %1592 = vmatpush.msra.mxu0 0.0
    %1593 = vmatpush.msra.mxu0 0.0
    %1594 = vmatpush.msra.mxu0 0.0
    %1595 = vmatpush.msra.mxu0 0.0
    %1596 = vmatpush.msra.mxu0 0.0
    %1597 = vmatpush.msra.mxu0 0.0
    %1598 = vmatpush.msra.mxu0 0.0
    %1599 = vmatpush.msra.mxu0 0.0
    %1600 = vmatpush.msra.mxu0 0.0
    %1601 = vmatpush.msra.mxu0 0.0
    %1602 = vmatpush.msra.mxu0 0.0
    %1603 = vmatpush.msra.mxu0 0.0
    %1604 = vmatpush.msra.mxu0 0.0
    %1605 = vmatpush.msra.mxu0 0.0
    %1606 = vmatpush.msra.mxu0 %v1584
    %1607 = vmatmul.f32.gmra.mxu0 %v1586
    %v1608 = vpop.f32.mrf.mxu0
    %v1609 = vadd.f32 0.0, %v1608
    %1610 = vmatmul.f32.gmra.mxu0 %v1589
    %v1611 = vpop.f32.mrf.mxu0
    %v1612 = vadd.f32 0.0, %v1611
    %1613 = vdwg.mxu0
    %v1614 = vadd.f32 %v1457, %v1609
    %v1615 = vadd.f32 %v1458, %v1612
    %v1616 = vld [vmem:[#allocation5 + $0x9] sm:$0x1]
    %v1617 = vperm.slane %v1616, 0
    %v1618 = vadd.f32 %v1614, %v1617
    %v1619 = vadd.f32 %v1615, %v1617
    %v1620 = vadd.f32 %v956, %v1618
    %v1621 = vadd.f32 %v957, %v1619
    %v1622 = vld [vmem:[#allocation5 + $0xa] sm:$0x1]
    %v1623 = vld [vmem:[#allocation5 + $0xb] sm:$0x1]
    %v1624 = vsel %vm109, %v1620, 0.0
    %1625 = vadd.xlane.f32.xlu0 %v1624
    %v1626 = vpop.xlane.xlu0 %1625
    %v1627 = vsel %vm109, %v1621, 0.0
    %1628 = vadd.xlane.f32.xlu0 %v1627
    %v1629 = vpop.xlane.xlu0 %1628
    %v1630 = vmul.f32 %v1626, %v782
    %v1631 = vmul.f32 %v1629, %v782
    %v1632 = vsub.f32 %v1620, %v1630
    %v1633 = vsub.f32 %v1621, %v1631
    %v1634 = vmul.f32 %v1632, %v1632
    %v1635 = vmul.f32 %v1633, %v1633
    %v1636 = vsel %vm109, %v1634, 0.0
    %1637 = vadd.xlane.f32.xlu0 %v1636
    %v1638 = vpop.xlane.xlu0 %1637
    %v1639 = vsel %vm109, %v1635, 0.0
    %1640 = vadd.xlane.f32.xlu0 %v1639
    %v1641 = vpop.xlane.xlu0 %1640
    %v1642 = vmul.f32 %v1638, %v782
    %v1643 = vmul.f32 %v1641, %v782
    %v1644 = vadd.f32 %v1642, 1e-05
    %v1645 = vadd.f32 %v1643, 1e-05
    %v1646 = vrsqrt.pop %v1644
    %v1647 = vmul.f32 %v1646, %v1644
    %v1648 = vmul.f32 %v1647, %v1646
    %v1649 = vmul.f32 0.5, %v1648
    %v1650 = vsub.f32 1.5, %v1649
    %v1651 = vmul.f32 %v1646, %v1650
    %vm1652 = vweird.f32 %v1644
    %vm1653 = vweird.f32 %v1646
    %vm1654 = vmor %vm1652, %vm1653
    %v1655 = vsel %vm1654, %v1646, %v1651
    %v1656 = vrsqrt.pop %v1645
    %v1657 = vmul.f32 %v1656, %v1645
    %v1658 = vmul.f32 %v1657, %v1656
    %v1659 = vmul.f32 0.5, %v1658
    %v1660 = vsub.f32 1.5, %v1659
    %v1661 = vmul.f32 %v1656, %v1660
    %vm1662 = vweird.f32 %v1645
    %vm1663 = vweird.f32 %v1656
    %vm1664 = vmor %vm1662, %vm1663
    %v1665 = vsel %vm1664, %v1656, %v1661
    %v1666 = vmul.f32 %v1632, %v1655
    %v1667 = vmul.f32 %v1633, %v1665
    %v1668 = vperm.slane %v1622, 0
    %v1669 = vmul.f32 %v1666, %v1668
    %v1670 = vmul.f32 %v1667, %v1668
    %v1671 = vperm.slane %v1623, 0
    %v1672 = vadd.f32 %v1669, %v1671
    %v1673 = vadd.f32 %v1670, %v1671
    %s1674 = scalar_lea.vmem %s3, 32
    %v1675 = vld [vmem:[%s1674] sm:$0xff]
    %v1676 = vld [vmem:[%s1674 + $0x8] sm:$0xff]
    %v1677 = vld [vmem:[%s1674 + $0x10] sm:$0xff]
    %v1678 = vld [vmem:[%s1674 + $0x18] sm:$0xff]
    %v1679 = vld [vmem:[#allocation5 + $0xc] sm:$0x1]
    %v1680 = vperm.slane %v1679, 0
    %v1682 = vsel %vm109, %v1672, 0
    %v1685 = vsel %vm109, %v1673, 0
    %1687 = vmatpush.msra.mxu0 0.0
    %1688 = vmatpush.msra.mxu0 0.0
    %1689 = vmatpush.msra.mxu0 0.0
    %1690 = vmatpush.msra.mxu0 0.0
    %1691 = vmatpush.msra.mxu0 0.0
    %1692 = vmatpush.msra.mxu0 0.0
    %1693 = vmatpush.msra.mxu0 0.0
    %1694 = vmatpush.msra.mxu0 0.0
    %1695 = vmatpush.msra.mxu0 0.0
    %1696 = vmatpush.msra.mxu0 0.0
    %1697 = vmatpush.msra.mxu0 0.0
    %1698 = vmatpush.msra.mxu0 0.0
    %1699 = vmatpush.msra.mxu0 %v1678
    %1700 = vmatpush.msra.mxu0 %v1677
    %1701 = vmatpush.msra.mxu0 %v1676
    %1702 = vmatpush.msra.mxu0 %v1675
    %1703 = vmatmul.f32.gmra.mxu0 %v1682
    %v1704 = vpop.f32.mrf.mxu0
    %v1705 = vadd.f32 %v1680, %v1704
    %1706 = vmatmul.f32.gmra.mxu0 %v1685
    %v1707 = vpop.f32.mrf.mxu0
    %v1708 = vadd.f32 %v1680, %v1707
    %1709 = vdwg.mxu0
    %v1710 = vmax.f32 %v1705, 0.0
    %v1711 = vmax.f32 %v1708, 0.0
    %s1712 = scalar_lea.vmem %s4, 64
    %v1713 = vld [vmem:[%s1712] sm:$0xff]
    %v1714 = vld [vmem:[%s1712 + $0x8] sm:$0xff]
    %v1715 = vld [vmem:[%s1712 + $0x10] sm:$0xff]
    %v1716 = vld [vmem:[%s1712 + $0x18] sm:$0xff]
    %v1717 = vld [vmem:[%s1712 + $0x20] sm:$0xff]
    %v1718 = vld [vmem:[%s1712 + $0x28] sm:$0xff]
    %v1719 = vld [vmem:[%s1712 + $0x30] sm:$0xff]
    %v1720 = vld [vmem:[%s1712 + $0x38] sm:$0xff]
    %v1721 = vld [vmem:[#allocation5 + $0xd] sm:$0x1]
    %v1722 = vperm.slane %v1721, 0
    %v1724 = vsel %vm874, %v1710, 0
    %v1727 = vsel %vm874, %v1711, 0
    %1729 = vmatpush.msra.mxu0 0.0
    %1730 = vmatpush.msra.mxu0 0.0
    %1731 = vmatpush.msra.mxu0 0.0
    %1732 = vmatpush.msra.mxu0 0.0
    %1733 = vmatpush.msra.mxu0 0.0
    %1734 = vmatpush.msra.mxu0 0.0
    %1735 = vmatpush.msra.mxu0 0.0
    %1736 = vmatpush.msra.mxu0 0.0
    %1737 = vmatpush.msra.mxu0 %v1720
    %1738 = vmatpush.msra.mxu0 %v1719
    %1739 = vmatpush.msra.mxu0 %v1718
    %1740 = vmatpush.msra.mxu0 %v1717
    %1741 = vmatpush.msra.mxu0 %v1716
    %1742 = vmatpush.msra.mxu0 %v1715
    %1743 = vmatpush.msra.mxu0 %v1714
    %1744 = vmatpush.msra.mxu0 %v1713
    %1745 = vmatmul.f32.gmra.mxu0 %v1724
    %v1746 = vpop.f32.mrf.mxu0
    %v1747 = vadd.f32 %v1722, %v1746
    %1748 = vmatmul.f32.gmra.mxu0 %v1727
    %v1749 = vpop.f32.mrf.mxu0
    %v1750 = vadd.f32 %v1722, %v1749
    %1751 = vdwg.mxu0
    %v1752 = vadd.f32 %v1672, %v1747
    %v1753 = vadd.f32 %v1673, %v1750
    %v1754 = vld [vmem:[#allocation5 + $0xe] sm:$0x1]
    %v1755 = vld [vmem:[#allocation5 + $0xf] sm:$0x1]
    %v1756 = vsel %vm109, %v1752, 0.0
    %1757 = vadd.xlane.f32.xlu0 %v1756
    %v1758 = vpop.xlane.xlu0 %1757
    %v1759 = vsel %vm109, %v1753, 0.0
    %1760 = vadd.xlane.f32.xlu0 %v1759
    %v1761 = vpop.xlane.xlu0 %1760
    %v1762 = vmul.f32 %v1758, %v782
    %v1763 = vmul.f32 %v1761, %v782
    %v1764 = vsub.f32 %v1752, %v1762
    %v1765 = vsub.f32 %v1753, %v1763
    %v1766 = vmul.f32 %v1764, %v1764
    %v1767 = vmul.f32 %v1765, %v1765
    %v1768 = vsel %vm109, %v1766, 0.0
    %1769 = vadd.xlane.f32.xlu0 %v1768
    %v1770 = vpop.xlane.xlu0 %1769
    %v1771 = vsel %vm109, %v1767, 0.0
    %1772 = vadd.xlane.f32.xlu0 %v1771
    %v1773 = vpop.xlane.xlu0 %1772
    %v1774 = vmul.f32 %v1770, %v782
    %v1775 = vmul.f32 %v1773, %v782
    %v1776 = vadd.f32 %v1774, 1e-05
    %v1777 = vadd.f32 %v1775, 1e-05
    %v1778 = vrsqrt.pop %v1776
    %v1779 = vmul.f32 %v1778, %v1776
    %v1780 = vmul.f32 %v1779, %v1778
    %v1781 = vmul.f32 0.5, %v1780
    %v1782 = vsub.f32 1.5, %v1781
    %v1783 = vmul.f32 %v1778, %v1782
    %vm1784 = vweird.f32 %v1776
    %vm1785 = vweird.f32 %v1778
    %vm1786 = vmor %vm1784, %vm1785
    %v1787 = vsel %vm1786, %v1778, %v1783
    %v1788 = vrsqrt.pop %v1777
    %v1789 = vmul.f32 %v1788, %v1777
    %v1790 = vmul.f32 %v1789, %v1788
    %v1791 = vmul.f32 0.5, %v1790
    %v1792 = vsub.f32 1.5, %v1791
    %v1793 = vmul.f32 %v1788, %v1792
    %vm1794 = vweird.f32 %v1777
    %vm1795 = vweird.f32 %v1788
    %vm1796 = vmor %vm1794, %vm1795
    %v1797 = vsel %vm1796, %v1788, %v1793
    %v1798 = vmul.f32 %v1764, %v1787
    %v1799 = vmul.f32 %v1765, %v1797
    %v1800 = vperm.slane %v1754, 0
    %v1801 = vmul.f32 %v1798, %v1800
    %v1802 = vmul.f32 %v1799, %v1800
    %v1803 = vperm.slane %v1755, 0
    %v1804 = vadd.f32 %v1801, %v1803
    %v1805 = vadd.f32 %v1802, %v1803
    %v1806 = vld [vmem:[#allocation5 + $0x10] sm:$0x1]
    %v1807 = vld [vmem:[#allocation5 + $0x11] sm:$0x1]
    %v1808 = vsel %vm109, %v1804, 0.0
    %1809 = vadd.xlane.f32.xlu0 %v1808
    %v1810 = vpop.xlane.xlu0 %1809
    %v1811 = vsel %vm109, %v1805, 0.0
    %1812 = vadd.xlane.f32.xlu0 %v1811
    %v1813 = vpop.xlane.xlu0 %1812
    %v1814 = vmul.f32 %v1810, %v782
    %v1815 = vmul.f32 %v1813, %v782
    %v1816 = vsub.f32 %v1804, %v1814
    %v1817 = vsub.f32 %v1805, %v1815
    %v1818 = vmul.f32 %v1816, %v1816
    %v1819 = vmul.f32 %v1817, %v1817
    %v1820 = vsel %vm109, %v1818, 0.0
    %1821 = vadd.xlane.f32.xlu0 %v1820
    %v1822 = vpop.xlane.xlu0 %1821
    %v1823 = vsel %vm109, %v1819, 0.0
    %1824 = vadd.xlane.f32.xlu0 %v1823
    %v1825 = vpop.xlane.xlu0 %1824
    %v1826 = vmul.f32 %v1822, %v782
    %v1827 = vmul.f32 %v1825, %v782
    %v1828 = vadd.f32 %v1826, 1e-05
    %v1829 = vadd.f32 %v1827, 1e-05
    %v1830 = vrsqrt.pop %v1828
    %v1831 = vmul.f32 %v1830, %v1828
    %v1832 = vmul.f32 %v1831, %v1830
    %v1833 = vmul.f32 0.5, %v1832
    %v1834 = vsub.f32 1.5, %v1833
    %v1835 = vmul.f32 %v1830, %v1834
    %vm1836 = vweird.f32 %v1828
    %vm1837 = vweird.f32 %v1830
    %vm1838 = vmor %vm1836, %vm1837
    %v1839 = vsel %vm1838, %v1830, %v1835
    %v1840 = vrsqrt.pop %v1829
    %v1841 = vmul.f32 %v1840, %v1829
    %v1842 = vmul.f32 %v1841, %v1840
    %v1843 = vmul.f32 0.5, %v1842
    %v1844 = vsub.f32 1.5, %v1843
    %v1845 = vmul.f32 %v1840, %v1844
    %vm1846 = vweird.f32 %v1829
    %vm1847 = vweird.f32 %v1840
    %vm1848 = vmor %vm1846, %vm1847
    %v1849 = vsel %vm1848, %v1840, %v1845
    %v1850 = vmul.f32 %v1816, %v1839
    %v1851 = vmul.f32 %v1817, %v1849
    %v1852 = vperm.slane %v1806, 0
    %v1853 = vmul.f32 %v1850, %v1852
    %v1854 = vmul.f32 %v1851, %v1852
    %v1855 = vperm.slane %v1807, 0
    %v1856 = vadd.f32 %v1853, %v1855
    %v1857 = vadd.f32 %v1854, %v1855
    %1858 = vst.msk [vmem:[#allocation7] sm:$0xff] %vm109, %v1856
    %1859 = vst.msk [vmem:[#allocation7 + $0x8] sm:$0xff] %vm109, %v1857
    // Predicated region
    $region34: #{transformer_encoder_us.1} parent=1 // pred_check
      _
    $region35: #{transformer_encoder_us.1} parent=1 // pred_check_branch
      %1861 = sbr.rel (0) target = $region37
    $region36: #{transformer_encoder_us.1} parent=1 // pred_region
      %1863 = vsyncadd [#allocation4], 0
      %s1864 = sshll.u32 [#allocation7], 4
      %s1865 = int_to_ptr.vmem [resolvable:$true] %s1864
      %s1866 = sshll.u32 %s6, 4
      %s1867 = int_to_ptr.hbm [resolvable:$true] %s1866
      %1872 = dma.vmem_to_hbm [thread:$0]  %s1865, 256, %s1867, [#allocation4], 128, 128, 8
    $region37: #{transformer_encoder_us.1} parent=1 // pred_fallthru
      _
    // Predicated region
    $region38: #{transformer_encoder_us.1} parent=1 // pred_check
      _
    $region39: #{transformer_encoder_us.1} parent=1 // pred_check_branch
      %1874 = sbr.rel (0) target = $region41
    $region40: #{transformer_encoder_us.1} parent=1 // pred_region
      %1876 = dma.done [#allocation4], 256
    $region41: #{transformer_encoder_us.1} parent=1 // pred_fallthru
      _
    %1877 = vsyncpa [#allocation3], 1
    %1878 = vsyncpa [#allocation6], 1
    %1879 = vsyncpa [#allocation4], 1

</llo_original>
